<compile_context>
chip_gen: v7x
topology: tpu7x:2x2x1
jax: 0.10.0
libtpu: 0.0.40
codegen_flags: <defaults>
</compile_context>

<pallas_src>
import functools

import jax
import jax.numpy as jnp
from jax.experimental import pallas as pl
from jax.experimental.pallas import tpu as pltpu


# ----------------------------------------------------------------------------
# Fused kernel: Sobel(x/y) -> 1x1 fusion -> LayerNorm -> GELU -> + residual
# ----------------------------------------------------------------------------
def _boundary_enhance_kernel(x_ref, halo_ref, wx_ref, wy_ref, b_ref, g_ref,
                             beta_ref, o_ref, *, eps, matmul_dtype):
    # x_ref:    (1, TH, W+2, C)   W-zero-padded rows of this block (no H halo)
    # halo_ref: (1, 1, 2, W+2, C) [row above block, row below block]
    #           (zero rows at the image border, supplied by the wrapper)
    xw = x_ref[0].astype(jnp.float32)                      # (TH, Wp2, C)
    halo = halo_ref[0, 0].astype(jnp.float32)              # (2,  Wp2, C)
    TH, Wp2, C = xw.shape
    W = Wp2 - 2

    if TH > 1:
        up = jnp.concatenate([halo[0:1], xw[:TH - 1]], axis=0)   # row r-1
        dn = jnp.concatenate([xw[1:], halo[1:2]], axis=0)        # row r+1
    else:
        up, dn = halo[0:1], halo[1:2]

    # Separable Sobel (cross-correlation, zero padded):
    #   Sx = [1,2,1]^T x [-1,0,1]      Sy = [-1,0,1]^T x [1,2,1]
    a = up + 2.0 * xw + dn                                  # row-smoothed
    e = dn - up                                             # row-diffed
    edge_x = a[:, 2:, :] - a[:, :-2, :]                     # (TH, W, C)
    edge_y = e[:, :-2, :] + 2.0 * e[:, 1:-1, :] + e[:, 2:, :]

    # 1x1 fusion over concat([ex, ey]) == ex @ Wx + ey @ Wy + b   (MXU)
    ex = edge_x.reshape(TH * W, C).astype(matmul_dtype)
    ey = edge_y.reshape(TH * W, C).astype(matmul_dtype)
    z = (jnp.dot(ex, wx_ref[...], preferred_element_type=jnp.float32)
         + jnp.dot(ey, wy_ref[...], preferred_element_type=jnp.float32)
         + b_ref[...])

    # Per-pixel LayerNorm over channels: single-pass stats, then exact GELU.
    mu = jnp.mean(z, axis=-1, keepdims=True)
    var = jnp.mean(z * z, axis=-1, keepdims=True) - mu * mu
    y = (z - mu) * jax.lax.rsqrt(var + eps)
    y = y * g_ref[...] + beta_ref[...]
    y = 0.5 * y * (1.0 + jax.lax.erf(y * 0.7071067811865476))   # PyTorch exact GELU

    res = xw[:, 1:-1, :].reshape(TH * W, C)                 # the residual = x itself
    o_ref[0] = (res + y).reshape(TH, W, C).astype(o_ref.dtype)


# ----------------------------------------------------------------------------
# Per-chip VMEM budget and row-tile selection
# ----------------------------------------------------------------------------
def _vmem_limit_bytes():
    phys = 128 * 1024 * 1024
    try:
        info = pltpu.get_tpu_info()
        phys = int(getattr(info, "vmem_capacity_bytes", phys))
    except Exception:  # non-TPU / interpret fallbacks
        pass
    # leave half of physical VMEM for Mosaic scratch / pipeline slack
    # (128 MiB on v5e/v6e -> 64 MiB limit; 64 MiB on v7x -> 32 MiB limit)
    return int(phys // 2)


def _choose_row_tile(N, H, W, C, act_itemsize, vmem_limit_bytes):
    """Largest row tile whose pipelined working set fits ~half the VMEM limit."""
    Wp2 = W + 2
    # Per output row: double-buffered input (Wp2*C) + output (W*C) rows in the
    # activation dtype, plus ~8 live f32 row temporaries inside the kernel
    # (xw/up/dn/a/e/edge_x/edge_y/z).
    per_row = (2 * Wp2 * C + 2 * W * C) * max(int(act_itemsize), 1) \
        + 8 * Wp2 * C * 4
    budget = max(vmem_limit_bytes // 2, per_row)
    th = max(1, min(H, budget // per_row))
    # keep >= ~4 grid steps so both v7x TensorCores and the DMA pipeline stay busy
    while th > 8 and N * (-(-H // th)) < 4:
        th //= 2
    if th > 8:
        th -= th % 8            # nicer DMA granularity (TH is not a tiled dim)
    if H >= 2:
        th = max(th, 2)
    return th


# ----------------------------------------------------------------------------
# Wrapper: NCHW API (to match the PyTorch module), NHWC + halo rows internally
# ----------------------------------------------------------------------------
def boundary_enhance(params, x_nchw, eps=1e-6, matmul_dtype=jnp.float32):
    N, C, H, W = x_nchw.shape
    dtype = x_nchw.dtype
    Wp2 = W + 2

    vmem_limit = _vmem_limit_bytes()
    TH = _choose_row_tile(N, H, W, C, jnp.dtype(dtype).itemsize, vmem_limit)
    R = -(-H // TH)             # cdiv
    Hp = R * TH

    # NCHW -> NHWC (channels -> lanes) + 1-column zero pad for the W halo (and the
    # H round-up rows); fuses with the layout pass XLA already does for the transpose.
    # TODO(synk): in an NHWC-native model these boundary transposes disappear.
    x_nhwc = jnp.transpose(x_nchw, (0, 2, 3, 1))
    x_w = jnp.pad(x_nhwc, ((0, 0), (0, Hp - H), (1, 1), (0, 0)))    # (N, Hp, Wp2, C)

    # Tiny halo side array: for each row block its row-above / row-below
    # (zero rows at the image border).  Replaces the previous three full shifted
    # input copies; extra HBM traffic is only 2/TH of the input.
    zero_row = jnp.zeros((N, 1, Wp2, C), dtype)
    tops = jnp.concatenate([zero_row, x_w[:, TH - 1:Hp - 1:TH]], axis=1)   # (N,R,Wp2,C)
    bots = jnp.concatenate([x_w[:, TH:Hp:TH], zero_row], axis=1)           # (N,R,Wp2,C)
    halo = jnp.stack([tops, bots], axis=2)                                 # (N,R,2,Wp2,C)

    # Constant operands, pre-cast once (no per-step .astype in the kernel).
    w = params["fusion_w"][:, :, 0, 0]                       # (C_out, 2C_in)
    wx = jnp.transpose(w[:, :C]).astype(matmul_dtype)        # (C_in, C_out)
    wy = jnp.transpose(w[:, C:]).astype(matmul_dtype)
    b = params["fusion_b"].reshape(1, C).astype(jnp.float32)
    g = params["ln_g"].reshape(1, C).astype(jnp.float32)
    beta = params["ln_b"].reshape(1, C).astype(jnp.float32)

    x_spec = pl.BlockSpec((1, TH, Wp2, C), lambda n, r: (n, r, 0, 0))
    halo_spec = pl.BlockSpec((1, 1, 2, Wp2, C), lambda n, r: (n, r, 0, 0, 0))

    # Single-buffer the constants once the doubled copy is big enough to matter
    # (e.g. two (C,C) f32 weights at C=1024 cost 16 MiB when double-buffered);
    # at small C the default double buffering is harmless.
    const_bytes = 2 * (2 * C * C * jnp.dtype(matmul_dtype).itemsize + 3 * C * 4)
    const_kw = dict(pipeline_mode=pl.Buffered(1)) if const_bytes > (1 << 20) else {}
    mat_spec = pl.BlockSpec((C, C), lambda n, r: (0, 0), **const_kw)
    vec_spec = pl.BlockSpec((1, C), lambda n, r: (0, 0), **const_kw)

    kernel = functools.partial(_boundary_enhance_kernel, eps=eps,
                               matmul_dtype=matmul_dtype)
    out = pl.pallas_call(
        kernel,
        out_shape=jax.ShapeDtypeStruct((N, Hp, W, C), dtype),
        grid_spec=pltpu.PrefetchScalarGridSpec(
            num_scalar_prefetch=0,
            grid=(N, R),
            in_specs=[x_spec, halo_spec, mat_spec, mat_spec,
                      vec_spec, vec_spec, vec_spec],
            out_specs=pl.BlockSpec((1, TH, W, C), lambda n, r: (n, r, 0, 0)),
        ),
        compiler_params=pltpu.CompilerParams(
            dimension_semantics=("parallel", "parallel"),
            vmem_limit_bytes=vmem_limit),
    )(x_w, halo, wx, wy, b, g, beta)

    if Hp != H:
        out = out[:, :H]
    return jnp.transpose(out, (0, 3, 1, 2))                  # back to NCHW


# ----------------------------------------------------------------------------
# Parameters (deterministic, synthetic) and a pure-JAX reference for sanity check
# ----------------------------------------------------------------------------
def init_params(key, in_channels, dtype=jnp.float32):
    C = in_channels
    k1, k2 = jax.random.split(key)
    return {
        "fusion_w": jax.random.normal(k1, (C, 2 * C, 1, 1), dtype) * 0.1,
        "fusion_b": jax.random.normal(k2, (C,), dtype) * 0.01,
        "ln_g": jnp.ones((C,), dtype),
        "ln_b": jnp.zeros((C,), dtype),
    }


def boundary_enhance_reference(params, x, eps=1e-6):
    """Plain-JAX reference (exact f32 shifted adds + HIGHEST-precision einsum)."""
    N, C, H, W = x.shape
    xp = jnp.pad(x, ((0, 0), (0, 0), (1, 1), (1, 1)))

    def sh(dh, dw):  # x[h+dh, w+dw] with zero padding
        return xp[:, :, 1 + dh:1 + dh + H, 1 + dw:1 + dw + W]

    ex = (-sh(-1, -1) + sh(-1, 1) - 2.0 * sh(0, -1) + 2.0 * sh(0, 1)
          - sh(1, -1) + sh(1, 1))
    ey = (-sh(-1, -1) - 2.0 * sh(-1, 0) - sh(-1, 1)
          + sh(1, -1) + 2.0 * sh(1, 0) + sh(1, 1))

    w = params["fusion_w"][:, :, 0, 0]                       # (C, 2C)
    hp = jax.lax.Precision.HIGHEST
    z = (jnp.einsum("oc,nchw->nohw", w[:, :C], ex, precision=hp)
         + jnp.einsum("oc,nchw->nohw", w[:, C:], ey, precision=hp)
         + params["fusion_b"][None, :, None, None])
    mu = jnp.mean(z, axis=1, keepdims=True)
    var = jnp.mean((z - mu) ** 2, axis=1, keepdims=True)
    y = (z - mu) * jax.lax.rsqrt(var + eps)
    y = y * params["ln_g"][None, :, None, None] + params["ln_b"][None, :, None, None]
    y = 0.5 * y * (1.0 + jax.lax.erf(y * 0.7071067811865476))
    return x + y


# ----------------------------------------------------------------------------
if __name__ == "__main__":
    key = jax.random.PRNGKey(0)
    k_x, k_p = jax.random.split(key)

    N, C, H, W = 2, 4, 16, 16
    x = jax.random.normal(k_x, (N, C, H, W), jnp.float32)
    params = init_params(k_p, C)

    out = jax.block_until_ready(boundary_enhance(params, x))
    assert out.shape == (N, C, H, W), out.shape
    assert bool(jnp.all(jnp.isfinite(out)))

    ref = jax.block_until_ready(boundary_enhance_reference(params, x))
    # All-f32 path: tight tolerance (margin only for MXU f32 pass decomposition).
    assert bool(jnp.allclose(out, ref, atol=2e-4, rtol=2e-4)), (
        float(jnp.max(jnp.abs(out - ref))))

    # Fast MXU path used on v6e / v7x: bf16 operands, f32 accumulation.
    out_bf16 = jax.block_until_ready(
        boundary_enhance(params, x, matmul_dtype=jnp.bfloat16))
    assert bool(jnp.allclose(out_bf16, ref, atol=5e-2, rtol=5e-2)), (
        float(jnp.max(jnp.abs(out_bf16 - ref))))

    print("KERNEL_OK")
</pallas_src>

<mosaic_0001>
module attributes {stable_mosaic.version = 11 : i64} {
  func.func @_boundary_enhance_kernel(%arg0: i32, %arg1: i32, %arg2: memref<1x8x18x4xf32, #tpu.memory_space<vmem>>, %arg3: memref<1x1x2x18x4xf32, #tpu.memory_space<vmem>>, %arg4: memref<4x4xf32, #tpu.memory_space<vmem>>, %arg5: memref<4x4xf32, #tpu.memory_space<vmem>>, %arg6: memref<1x4xf32, #tpu.memory_space<vmem>>, %arg7: memref<1x4xf32, #tpu.memory_space<vmem>>, %arg8: memref<1x4xf32, #tpu.memory_space<vmem>>, %arg9: memref<1x8x16x4xf32, #tpu.memory_space<vmem>>) attributes {dimension_semantics = [#tpu.dimension_semantics<parallel>, #tpu.dimension_semantics<parallel>], iteration_bounds = array<i64: 2, 2>, scalar_prefetch = 0 : i64, scratch_operands = 0 : i64, tpu.core_type = #tpu.core_type<tc>, window_params = [{transform_indices = @transform_0, window_bounds = array<i64: 1, 8, 18, 4>}, {transform_indices = @transform_1, window_bounds = array<i64: 1, 1, 2, 18, 4>}, {pipeline_mode = #tpu.pipeline_mode<synchronous>, transform_indices = @transform_2, window_bounds = array<i64: 4, 4>}, {pipeline_mode = #tpu.pipeline_mode<synchronous>, transform_indices = @transform_3, window_bounds = array<i64: 4, 4>}, {pipeline_mode = #tpu.pipeline_mode<synchronous>, transform_indices = @transform_4, window_bounds = array<i64: 1, 4>}, {pipeline_mode = #tpu.pipeline_mode<synchronous>, transform_indices = @transform_5, window_bounds = array<i64: 1, 4>}, {pipeline_mode = #tpu.pipeline_mode<synchronous>, transform_indices = @transform_6, window_bounds = array<i64: 1, 4>}, {transform_indices = @transform_7, window_bounds = array<i64: 1, 8, 16, 4>}]} {
    %c0 = arith.constant 0 : index
    %c0_0 = arith.constant 0 : index
    %c0_1 = arith.constant 0 : index
    %c0_2 = arith.constant 0 : index
    %0 = vector.load %arg2[%c0, %c0_0, %c0_1, %c0_2] : memref<1x8x18x4xf32, #tpu.memory_space<vmem>>, vector<1x8x18x4xf32>
    %1 = vector.shape_cast %0 : vector<1x8x18x4xf32> to vector<8x18x4xf32>
    %c0_3 = arith.constant 0 : index
    %c0_4 = arith.constant 0 : index
    %c0_5 = arith.constant 0 : index
    %c0_6 = arith.constant 0 : index
    %c0_7 = arith.constant 0 : index
    %2 = vector.load %arg3[%c0_3, %c0_4, %c0_5, %c0_6, %c0_7] : memref<1x1x2x18x4xf32, #tpu.memory_space<vmem>>, vector<1x1x2x18x4xf32>
    %3 = vector.shape_cast %2 : vector<1x1x2x18x4xf32> to vector<2x18x4xf32>
    %4 = vector.extract_strided_slice %3 {offsets = [0, 0, 0], sizes = [1, 18, 4], strides = [1, 1, 1]} : vector<2x18x4xf32> to vector<1x18x4xf32>
    %5 = vector.extract_strided_slice %1 {offsets = [0, 0, 0], sizes = [7, 18, 4], strides = [1, 1, 1]} : vector<8x18x4xf32> to vector<7x18x4xf32>
    %6 = tpu.concatenate %4, %5 in 0 : vector<1x18x4xf32>, vector<7x18x4xf32> -> vector<8x18x4xf32>
    %7 = vector.extract_strided_slice %1 {offsets = [1, 0, 0], sizes = [7, 18, 4], strides = [1, 1, 1]} : vector<8x18x4xf32> to vector<7x18x4xf32>
    %8 = vector.extract_strided_slice %3 {offsets = [1, 0, 0], sizes = [1, 18, 4], strides = [1, 1, 1]} : vector<2x18x4xf32> to vector<1x18x4xf32>
    %9 = tpu.concatenate %7, %8 in 0 : vector<7x18x4xf32>, vector<1x18x4xf32> -> vector<8x18x4xf32>
    %cst = arith.constant 2.000000e+00 : f32
    %10 = vector.broadcast %cst : f32 to vector<8x18x4xf32>
    %11 = arith.mulf %10, %1 : vector<8x18x4xf32>
    %12 = arith.addf %6, %11 : vector<8x18x4xf32>
    %13 = arith.addf %12, %9 : vector<8x18x4xf32>
    %14 = arith.subf %9, %6 : vector<8x18x4xf32>
    %15 = vector.extract_strided_slice %13 {offsets = [0, 2, 0], sizes = [8, 16, 4], strides = [1, 1, 1]} : vector<8x18x4xf32> to vector<8x16x4xf32>
    %16 = vector.extract_strided_slice %13 {offsets = [0, 0, 0], sizes = [8, 16, 4], strides = [1, 1, 1]} : vector<8x18x4xf32> to vector<8x16x4xf32>
    %17 = arith.subf %15, %16 : vector<8x16x4xf32>
    %18 = vector.extract_strided_slice %14 {offsets = [0, 0, 0], sizes = [8, 16, 4], strides = [1, 1, 1]} : vector<8x18x4xf32> to vector<8x16x4xf32>
    %19 = vector.extract_strided_slice %14 {offsets = [0, 1, 0], sizes = [8, 16, 4], strides = [1, 1, 1]} : vector<8x18x4xf32> to vector<8x16x4xf32>
    %cst_8 = arith.constant 2.000000e+00 : f32
    %20 = vector.broadcast %cst_8 : f32 to vector<8x16x4xf32>
    %21 = arith.mulf %20, %19 : vector<8x16x4xf32>
    %22 = arith.addf %18, %21 : vector<8x16x4xf32>
    %23 = vector.extract_strided_slice %14 {offsets = [0, 2, 0], sizes = [8, 16, 4], strides = [1, 1, 1]} : vector<8x18x4xf32> to vector<8x16x4xf32>
    %24 = arith.addf %22, %23 : vector<8x16x4xf32>
    %25 = vector.shape_cast %17 : vector<8x16x4xf32> to vector<128x4xf32>
    %26 = vector.shape_cast %24 : vector<8x16x4xf32> to vector<128x4xf32>
    %c0_9 = arith.constant 0 : index
    %c0_10 = arith.constant 0 : index
    %27 = vector.load %arg4[%c0_9, %c0_10] : memref<4x4xf32, #tpu.memory_space<vmem>>, vector<4x4xf32>
    %cst_11 = arith.constant dense<0.000000e+00> : vector<128x4xf32>
    %28 = tpu.matmul %25, %27, %cst_11 {dimension_numbers = #tpu.dot_dimension_numbers<[1], [0], [0], [1], [0, 0, 1, 1], [], []>} : vector<128x4xf32>, vector<4x4xf32>, vector<128x4xf32> -> vector<128x4xf32>
    %c0_12 = arith.constant 0 : index
    %c0_13 = arith.constant 0 : index
    %29 = vector.load %arg5[%c0_12, %c0_13] : memref<4x4xf32, #tpu.memory_space<vmem>>, vector<4x4xf32>
    %cst_14 = arith.constant dense<0.000000e+00> : vector<128x4xf32>
    %30 = tpu.matmul %26, %29, %cst_14 {dimension_numbers = #tpu.dot_dimension_numbers<[1], [0], [0], [1], [0, 0, 1, 1], [], []>} : vector<128x4xf32>, vector<4x4xf32>, vector<128x4xf32> -> vector<128x4xf32>
    %31 = arith.addf %28, %30 : vector<128x4xf32>
    %c0_15 = arith.constant 0 : index
    %c0_16 = arith.constant 0 : index
    %32 = vector.load %arg6[%c0_15, %c0_16] : memref<1x4xf32, #tpu.memory_space<vmem>>, vector<1x4xf32>
    %33 = vector.broadcast %32 : vector<1x4xf32> to vector<128x4xf32>
    %34 = arith.addf %31, %33 : vector<128x4xf32>
    %cst_17 = arith.constant dense<0.000000e+00> : vector<128xf32>
    %35 = vector.multi_reduction <add>, %34, %cst_17 [1] : vector<128x4xf32> to vector<128xf32>
    %36 = vector.shape_cast %35 : vector<128xf32> to vector<128x1xf32>
    %cst_18 = arith.constant 4.000000e+00 : f32
    %37 = vector.broadcast %cst_18 : f32 to vector<128x1xf32>
    %38 = arith.divf %36, %37 : vector<128x1xf32>
    %39 = arith.mulf %34, %34 : vector<128x4xf32>
    %cst_19 = arith.constant dense<0.000000e+00> : vector<128xf32>
    %40 = vector.multi_reduction <add>, %39, %cst_19 [1] : vector<128x4xf32> to vector<128xf32>
    %41 = vector.shape_cast %40 : vector<128xf32> to vector<128x1xf32>
    %cst_20 = arith.constant 4.000000e+00 : f32
    %42 = vector.broadcast %cst_20 : f32 to vector<128x1xf32>
    %43 = arith.divf %41, %42 : vector<128x1xf32>
    %44 = arith.mulf %38, %38 : vector<128x1xf32>
    %45 = arith.subf %43, %44 : vector<128x1xf32>
    %46 = vector.broadcast %38 : vector<128x1xf32> to vector<128x4xf32>
    %47 = arith.subf %34, %46 : vector<128x4xf32>
    %cst_21 = arith.constant 9.99999997E-7 : f32
    %48 = vector.broadcast %cst_21 : f32 to vector<128x1xf32>
    %49 = arith.addf %45, %48 : vector<128x1xf32>
    %50 = math.rsqrt %49 : vector<128x1xf32>
    %51 = vector.broadcast %50 : vector<128x1xf32> to vector<128x4xf32>
    %52 = arith.mulf %47, %51 : vector<128x4xf32>
    %c0_22 = arith.constant 0 : index
    %c0_23 = arith.constant 0 : index
    %53 = vector.load %arg7[%c0_22, %c0_23] : memref<1x4xf32, #tpu.memory_space<vmem>>, vector<1x4xf32>
    %54 = vector.broadcast %53 : vector<1x4xf32> to vector<128x4xf32>
    %55 = arith.mulf %52, %54 : vector<128x4xf32>
    %c0_24 = arith.constant 0 : index
    %c0_25 = arith.constant 0 : index
    %56 = vector.load %arg8[%c0_24, %c0_25] : memref<1x4xf32, #tpu.memory_space<vmem>>, vector<1x4xf32>
    %57 = vector.broadcast %56 : vector<1x4xf32> to vector<128x4xf32>
    %58 = arith.addf %55, %57 : vector<128x4xf32>
    %cst_26 = arith.constant 5.000000e-01 : f32
    %59 = vector.broadcast %cst_26 : f32 to vector<128x4xf32>
    %60 = arith.mulf %59, %58 : vector<128x4xf32>
    %cst_27 = arith.constant 0.707106769 : f32
    %61 = vector.broadcast %cst_27 : f32 to vector<128x4xf32>
    %62 = arith.mulf %58, %61 : vector<128x4xf32>
    %63 = math.erf %62 : vector<128x4xf32>
    %cst_28 = arith.constant 1.000000e+00 : f32
    %64 = vector.broadcast %cst_28 : f32 to vector<128x4xf32>
    %65 = arith.addf %64, %63 : vector<128x4xf32>
    %66 = arith.mulf %60, %65 : vector<128x4xf32>
    %67 = vector.extract_strided_slice %1 {offsets = [0, 1, 0], sizes = [8, 16, 4], strides = [1, 1, 1]} : vector<8x18x4xf32> to vector<8x16x4xf32>
    %68 = vector.shape_cast %67 : vector<8x16x4xf32> to vector<128x4xf32>
    %69 = arith.addf %68, %66 : vector<128x4xf32>
    %70 = vector.shape_cast %69 : vector<128x4xf32> to vector<8x16x4xf32>
    %c0_29 = arith.constant 0 : index
    %c0_30 = arith.constant 0 : index
    %c0_31 = arith.constant 0 : index
    %c0_32 = arith.constant 0 : index
    %71 = vector.load %arg9[%c0_29, %c0_30, %c0_31, %c0_32] : memref<1x8x16x4xf32, #tpu.memory_space<vmem>>, vector<1x8x16x4xf32>
    %72 = vector.shape_cast %71 : vector<1x8x16x4xf32> to vector<8x16x4xf32>
    %73 = vector.shape_cast %70 : vector<8x16x4xf32> to vector<1x8x16x4xf32>
    tpu.vector_store %arg9[%c0_29, %c0_30, %c0_31, %c0_32], %73 {strides = array<i32>} : memref<1x8x16x4xf32, #tpu.memory_space<vmem>>, vector<1x8x16x4xf32>,
    return
  }
  func.func @transform_0(%arg0: i32, %arg1: i32) -> (i32, i32, i32, i32) {
    %c0_i32 = arith.constant 0 : i32
    %c0_i32_0 = arith.constant 0 : i32
    %c0_i32_1 = arith.constant 0 : i32
    return %arg0, %arg1, %c0_i32, %c0_i32_0 : i32, i32, i32, i32
  }
  func.func @transform_1(%arg0: i32, %arg1: i32) -> (i32, i32, i32, i32, i32) {
    %c0_i32 = arith.constant 0 : i32
    %c0_i32_0 = arith.constant 0 : i32
    %c0_i32_1 = arith.constant 0 : i32
    %c0_i32_2 = arith.constant 0 : i32
    return %arg0, %arg1, %c0_i32, %c0_i32_0, %c0_i32_1 : i32, i32, i32, i32, i32
  }
  func.func @transform_2(%arg0: i32, %arg1: i32) -> (i32, i32) {
    %c0_i32 = arith.constant 0 : i32
    %c0_i32_0 = arith.constant 0 : i32
    %c0_i32_1 = arith.constant 0 : i32
    return %c0_i32, %c0_i32_0 : i32, i32
  }
  func.func @transform_3(%arg0: i32, %arg1: i32) -> (i32, i32) {
    %c0_i32 = arith.constant 0 : i32
    %c0_i32_0 = arith.constant 0 : i32
    %c0_i32_1 = arith.constant 0 : i32
    return %c0_i32, %c0_i32_0 : i32, i32
  }
  func.func @transform_4(%arg0: i32, %arg1: i32) -> (i32, i32) {
    %c0_i32 = arith.constant 0 : i32
    %c0_i32_0 = arith.constant 0 : i32
    %c0_i32_1 = arith.constant 0 : i32
    return %c0_i32, %c0_i32_0 : i32, i32
  }
  func.func @transform_5(%arg0: i32, %arg1: i32) -> (i32, i32) {
    %c0_i32 = arith.constant 0 : i32
    %c0_i32_0 = arith.constant 0 : i32
    %c0_i32_1 = arith.constant 0 : i32
    return %c0_i32, %c0_i32_0 : i32, i32
  }
  func.func @transform_6(%arg0: i32, %arg1: i32) -> (i32, i32) {
    %c0_i32 = arith.constant 0 : i32
    %c0_i32_0 = arith.constant 0 : i32
    %c0_i32_1 = arith.constant 0 : i32
    return %c0_i32, %c0_i32_0 : i32, i32
  }
  func.func @transform_7(%arg0: i32, %arg1: i32) -> (i32, i32, i32, i32) {
    %c0_i32 = arith.constant 0 : i32
    %c0_i32_0 = arith.constant 0 : i32
    %c0_i32_1 = arith.constant 0 : i32
    return %arg0, %arg1, %c0_i32, %c0_i32_0 : i32, i32, i32, i32
  }
}

</mosaic_0001>

<llo_original>
// kernel: tpu_custom_call.1
$region0: #{tpu_custom_call.1}
  #allocation0 [shape = 'u32[]', space=smem, size = 0x4, offset = 0x4, fixed_abs, tag = 'smem constant byte address 0x4 - core index']
  #allocation1 [shape = 'u32[144,128]{1,0:T(1,128)}', space=vmem, size = 0x12000, scoped, tag = 'internal scratch']
  %s0 = inlined_call_operand.hbm [shape: f32[2,16,18,4], index: 0, kind: input, shape index: {}]
  %s1 = inlined_call_operand.hbm [shape: f32[2,2,2,18,4], index: 1, kind: input, shape index: {}]
  %s2 = inlined_call_operand.hbm [shape: f32[4,4], index: 2, kind: input, shape index: {}]
  %s3 = inlined_call_operand.hbm [shape: f32[4,4], index: 3, kind: input, shape index: {}]
  %s4 = inlined_call_operand.hbm [shape: f32[1,4], index: 4, kind: input, shape index: {}]
  %s5 = inlined_call_operand.hbm [shape: f32[1,4], index: 5, kind: input, shape index: {}]
  %s6 = inlined_call_operand.hbm [shape: f32[1,4], index: 6, kind: input, shape index: {}]
  %s7 = inlined_call_operand.hbm [shape: f32[2,16,16,4], index: 7, kind: output, shape index: {}]
  %s8 = sld [smem:[#allocation0]]
  $region89: #{tpu_custom_call.1} parent=0
    _
  %s10 = ssub.s32 1, %s8
  %s11 = scalar_select 0, %s10, %s8
  $region1: #{tpu_custom_call.1} parent=0
    #allocation2 [shape = 'u8[196608]{0}', space=vmem, size = 0x30000, scoped, tag = 'input window, operand 0']
    #allocation3 [shape = 's32[2]{0}', space=sflag, size = 0x8, scoped, tag = 'scoped memory for tpu_custom_call.1']
    #allocation4 [shape = 's32[2]{0}', space=sflag, size = 0x8, scoped, tag = 'scoped memory for tpu_custom_call.1']
    #allocation5 [shape = 'u8[49152]{0}', space=vmem, size = 0xc000, scoped, tag = 'input window, operand 1']
    #allocation6 [shape = 's32[2]{0}', space=sflag, size = 0x8, scoped, tag = 'scoped memory for tpu_custom_call.1']
    #allocation7 [shape = 'u8[2048]{0}', space=vmem, size = 0x800, scoped, tag = 'input window, operand 2, single buffered']
    #allocation8 [shape = 'u8[2048]{0}', space=vmem, size = 0x800, scoped, tag = 'input window, operand 3, single buffered']
    #allocation9 [shape = 's32[1]{0}', space=sflag, size = 0x4, scoped, tag = 'scoped memory for tpu_custom_call.1']
    #allocation10 [shape = 'u8[512]{0}', space=vmem, size = 0x400, scoped, tag = 'input window, operand 4, single buffered']
    #allocation11 [shape = 'u8[512]{0}', space=vmem, size = 0x400, scoped, tag = 'input window, operand 5, single buffered']
    #allocation12 [shape = 's32[1]{0}', space=sflag, size = 0x4, scoped, tag = 'scoped memory for tpu_custom_call.1']
    #allocation13 [shape = 'u8[512]{0}', space=vmem, size = 0x400, scoped, tag = 'input window, operand 6, single buffered']
    #allocation14 [shape = 'u8[131072]{0}', space=vmem, size = 0x20000, scoped, tag = 'output window, operand 0']
    %12 = vsyncpa [#allocation3], 0
    %s13 = scalar_lea.sflag [#allocation3], 1
    %14 = vsyncpa %s13, 0
    %15 = vsyncpa [#allocation6], 0
    %s16 = scalar_lea.sflag [#allocation6], 1
    %17 = vsyncpa %s16, 0
    %18 = vsyncpa [#allocation9], 0
    %19 = vsyncpa [#allocation12], 0
    %20 = vsyncpa [#allocation4], 0
    %s21 = scalar_lea.sflag [#allocation4], 1
    %22 = vsyncpa %s21, 0
    loop: start=0, step=1, limit=6
    $region2: #{tpu_custom_call.1} parent=1 // loop_pre_header
      _
    $region3: #{tpu_custom_call.1} parent=1 // loop_header
      %s24 = sphi 0, %s28
      %p25 = scmp.ge.s32.totalorder %s24, 6
      %s31 = sphi 0, %s43
      %s32 = sphi 0, %s39
      %s33 = sphi 0, %s31
      %s34 = sphi 0, %s32
      %s35 = sphi 0, %s33
      %s36 = sphi 0, %s34
      %s48 = sphi 0, %s50
      %s51 = sphi 0, %s48
      %s52 = sphi 0, %s51
      %s68 = sphi 0, %s52
      %s76 = sphi 0, %s78
      %s79 = sphi 0, %s76
      %s80 = sphi 0, %s79
      %s96 = sphi 0, %s80
      %s100 = sphi 0, %s100
      %s102 = sphi 0, %s100
      %s103 = sphi 0, %s102
      %s117 = sphi 0, %s103
      %s121 = sphi 0, %s121
      %s123 = sphi 0, %s121
      %s124 = sphi 0, %s123
      %s138 = sphi 0, %s124
      %s142 = sphi 0, %s142
      %s144 = sphi 0, %s142
      %s145 = sphi 0, %s144
      %s159 = sphi 0, %s145
      %s163 = sphi 0, %s163
      %s165 = sphi 0, %s163
      %s166 = sphi 0, %s165
      %s180 = sphi 0, %s166
      %s184 = sphi 0, %s184
      %s186 = sphi 0, %s184
      %s187 = sphi 0, %s186
      %s201 = sphi 0, %s187
      %s209 = sphi 0, %s211
      %s212 = sphi 0, %s209
      %s213 = sphi 0, %s212
      %s229 = sphi 0, %s213
    $region4: #{tpu_custom_call.1} parent=1 // loop_header_branch
      %27 = sbr.rel (%p25) target = $region8
    $region5: #{tpu_custom_call.1} parent=1 // loop_body
      %s29 = ssub.s32 %s24, 1
      %s30 = ssub.s32 %s24, 2
      %s37 = sadd.s32 1, %s32
      %p38 = scmp.ge.s32.totalorder %s37, 2
      %s39 = scalar_select %p38, 0, %s37
      %s40 = sadd.s32 1, %s31
      %s41 = scalar_select %p38, %s40, %s31
      %p42 = scmp.ge.s32.totalorder %s41, 2
      %s43 = scalar_select %p42, 0, %s41
      %s44 = ssub.s32 %s31, %s43
      %s45 = ssub.s32 %s32, %s39
      %s46 = sor.u32 %s44, %s45
      %p47 = scmp.eq.s32.totalorder %s46, 0
      %s49 = sadd.s32 %s48, 1
      %s50 = scalar_select %p47, %s48, %s49
      %p53 = pneg %p47
      %p54 = scmp.eq.s32.totalorder %s24, 3
      %p55 = por %p53, %p54
      %p56 = scmp.ne.s32.totalorder %s48, %s51
      %p57 = scmp.eq.s32.totalorder %s24, 0
      %p58 = por %p56, %p57
      %p59 = scmp.ne.s32.totalorder %s48, %s51
      %p60 = scmp.eq.s32.totalorder %s29, 3
      %p61 = por %p59, %p60
      %p62 = scmp.ne.s32.totalorder %s51, %s52
      %p63 = scmp.eq.s32.totalorder %s29, 0
      %p64 = por %p62, %p63
      %p65 = scmp.ne.s32.totalorder %s51, %s52
      %p66 = scmp.eq.s32.totalorder %s30, 3
      %p67 = por %p65, %p66
      %p69 = scmp.ne.s32.totalorder %s52, %s68
      %p70 = scmp.eq.s32.totalorder %s30, 0
      %p71 = por %p69, %p70
      %s72 = ssub.s32 %s31, %s43
      %s73 = ssub.s32 %s32, %s39
      %s74 = sor.u32 %s72, %s73
      %p75 = scmp.eq.s32.totalorder %s74, 0
      %s77 = sadd.s32 %s76, 1
      %s78 = scalar_select %p75, %s76, %s77
      %p81 = pneg %p75
      %p82 = scmp.eq.s32.totalorder %s24, 3
      %p83 = por %p81, %p82
      %p84 = scmp.ne.s32.totalorder %s76, %s79
      %p85 = scmp.eq.s32.totalorder %s24, 0
      %p86 = por %p84, %p85
      %p87 = scmp.ne.s32.totalorder %s76, %s79
      %p88 = scmp.eq.s32.totalorder %s29, 3
      %p89 = por %p87, %p88
      %p90 = scmp.ne.s32.totalorder %s79, %s80
      %p91 = scmp.eq.s32.totalorder %s29, 0
      %p92 = por %p90, %p91
      %p93 = scmp.ne.s32.totalorder %s79, %s80
      %p94 = scmp.eq.s32.totalorder %s30, 3
      %p95 = por %p93, %p94
      %p97 = scmp.ne.s32.totalorder %s80, %s96
      %p98 = scmp.eq.s32.totalorder %s30, 0
      %p99 = por %p97, %p98
      %s101 = sadd.s32 %s100, 1
      %p104 = scmp.eq.s32.totalorder %s24, 3
      %p105 = scmp.ne.s32.totalorder %s100, %s102
      %p106 = scmp.eq.s32.totalorder %s24, 0
      %p107 = por %p105, %p106
      %p108 = scmp.ne.s32.totalorder %s100, %s102
      %p109 = scmp.eq.s32.totalorder %s29, 3
      %p110 = por %p108, %p109
      %p111 = scmp.ne.s32.totalorder %s102, %s103
      %p112 = scmp.eq.s32.totalorder %s29, 0
      %p113 = por %p111, %p112
      %p114 = scmp.ne.s32.totalorder %s102, %s103
      %p115 = scmp.eq.s32.totalorder %s30, 3
      %p116 = por %p114, %p115
      %p118 = scmp.ne.s32.totalorder %s103, %s117
      %p119 = scmp.eq.s32.totalorder %s30, 0
      %p120 = por %p118, %p119
      %s122 = sadd.s32 %s121, 1
      %p125 = scmp.eq.s32.totalorder %s24, 3
      %p126 = scmp.ne.s32.totalorder %s121, %s123
      %p127 = scmp.eq.s32.totalorder %s24, 0
      %p128 = por %p126, %p127
      %p129 = scmp.ne.s32.totalorder %s121, %s123
      %p130 = scmp.eq.s32.totalorder %s29, 3
      %p131 = por %p129, %p130
      %p132 = scmp.ne.s32.totalorder %s123, %s124
      %p133 = scmp.eq.s32.totalorder %s29, 0
      %p134 = por %p132, %p133
      %p135 = scmp.ne.s32.totalorder %s123, %s124
      %p136 = scmp.eq.s32.totalorder %s30, 3
      %p137 = por %p135, %p136
      %p139 = scmp.ne.s32.totalorder %s124, %s138
      %p140 = scmp.eq.s32.totalorder %s30, 0
      %p141 = por %p139, %p140
      %s143 = sadd.s32 %s142, 1
      %p146 = scmp.eq.s32.totalorder %s24, 3
      %p147 = scmp.ne.s32.totalorder %s142, %s144
      %p148 = scmp.eq.s32.totalorder %s24, 0
      %p149 = por %p147, %p148
      %p150 = scmp.ne.s32.totalorder %s142, %s144
      %p151 = scmp.eq.s32.totalorder %s29, 3
      %p152 = por %p150, %p151
      %p153 = scmp.ne.s32.totalorder %s144, %s145
      %p154 = scmp.eq.s32.totalorder %s29, 0
      %p155 = por %p153, %p154
      %p156 = scmp.ne.s32.totalorder %s144, %s145
      %p157 = scmp.eq.s32.totalorder %s30, 3
      %p158 = por %p156, %p157
      %p160 = scmp.ne.s32.totalorder %s145, %s159
      %p161 = scmp.eq.s32.totalorder %s30, 0
      %p162 = por %p160, %p161
      %s164 = sadd.s32 %s163, 1
      %p167 = scmp.eq.s32.totalorder %s24, 3
      %p168 = scmp.ne.s32.totalorder %s163, %s165
      %p169 = scmp.eq.s32.totalorder %s24, 0
      %p170 = por %p168, %p169
      %p171 = scmp.ne.s32.totalorder %s163, %s165
      %p172 = scmp.eq.s32.totalorder %s29, 3
      %p173 = por %p171, %p172
      %p174 = scmp.ne.s32.totalorder %s165, %s166
      %p175 = scmp.eq.s32.totalorder %s29, 0
      %p176 = por %p174, %p175
      %p177 = scmp.ne.s32.totalorder %s165, %s166
      %p178 = scmp.eq.s32.totalorder %s30, 3
      %p179 = por %p177, %p178
      %p181 = scmp.ne.s32.totalorder %s166, %s180
      %p182 = scmp.eq.s32.totalorder %s30, 0
      %p183 = por %p181, %p182
      %s185 = sadd.s32 %s184, 1
      %p188 = scmp.eq.s32.totalorder %s24, 3
      %p189 = scmp.ne.s32.totalorder %s184, %s186
      %p190 = scmp.eq.s32.totalorder %s24, 0
      %p191 = por %p189, %p190
      %p192 = scmp.ne.s32.totalorder %s184, %s186
      %p193 = scmp.eq.s32.totalorder %s29, 3
      %p194 = por %p192, %p193
      %p195 = scmp.ne.s32.totalorder %s186, %s187
      %p196 = scmp.eq.s32.totalorder %s29, 0
      %p197 = por %p195, %p196
      %p198 = scmp.ne.s32.totalorder %s186, %s187
      %p199 = scmp.eq.s32.totalorder %s30, 3
      %p200 = por %p198, %p199
      %p202 = scmp.ne.s32.totalorder %s187, %s201
      %p203 = scmp.eq.s32.totalorder %s30, 0
      %p204 = por %p202, %p203
      %s205 = ssub.s32 %s31, %s43
      %s206 = ssub.s32 %s32, %s39
      %s207 = sor.u32 %s205, %s206
      %p208 = scmp.eq.s32.totalorder %s207, 0
      %s210 = sadd.s32 %s209, 1
      %s211 = scalar_select %p208, %s209, %s210
      %p214 = pneg %p208
      %p215 = scmp.eq.s32.totalorder %s24, 3
      %p216 = por %p214, %p215
      %p217 = scmp.ne.s32.totalorder %s209, %s212
      %p218 = scmp.eq.s32.totalorder %s24, 0
      %p219 = por %p217, %p218
      %p220 = scmp.ne.s32.totalorder %s209, %s212
      %p221 = scmp.eq.s32.totalorder %s29, 3
      %p222 = por %p220, %p221
      %p223 = scmp.ne.s32.totalorder %s212, %s213
      %p224 = scmp.eq.s32.totalorder %s29, 0
      %p225 = por %p223, %p224
      %p226 = scmp.ne.s32.totalorder %s212, %s213
      %p227 = scmp.eq.s32.totalorder %s30, 3
      %p228 = por %p226, %p227
      %p230 = scmp.ne.s32.totalorder %s213, %s229
      %p231 = scmp.eq.s32.totalorder %s30, 0
      %p232 = por %p230, %p231
      %p233 = scmp.le.s32.totalorder 1, %s24
      %p234 = scmp.lt.s32.totalorder %s24, 5
      %p235 = pnand %p233, %p234
      %p236 = pneg %p235
      // Predicated region
      $region9: #{tpu_custom_call.1} parent=5 // pred_check
        _
      $region10: #{tpu_custom_call.1} parent=5 // pred_check_branch
        %238 = sbr.rel (%p235) target = $region12
      $region11: #{tpu_custom_call.1} parent=5 // pred_region
        %s239 = ssub.s32 %s24, 1
        // Predicated region
        $region13: #{tpu_custom_call.1} parent=11 // pred_check
          %p240 = pneg %p113
        $region14: #{tpu_custom_call.1} parent=11 // pred_check_branch
          %242 = sbr.rel (%p240) target = $region16
        $region15: #{tpu_custom_call.1} parent=11 // pred_region
          %s244 = ssub.s32 64, 64
          %245 = vsyncadd [#allocation6], %s244
          %s247 = sshll.u32 [#allocation7], 4
          %s248 = int_to_ptr.vmem [resolvable:$true] %s247
          %250 = dma.hbm_to_vmem [thread:$0]  %s2, 64, %s248, [#allocation6]
        $region16: #{tpu_custom_call.1} parent=11 // pred_fallthru
          _
        // Predicated region
        $region17: #{tpu_custom_call.1} parent=11 // pred_check
          %p251 = pneg %p134
        $region18: #{tpu_custom_call.1} parent=11 // pred_check_branch
          %253 = sbr.rel (%p251) target = $region20
        $region19: #{tpu_custom_call.1} parent=11 // pred_region
          %s255 = ssub.s32 64, 64
          %256 = vsyncadd [#allocation9], %s255
          %s258 = sshll.u32 [#allocation8], 4
          %s259 = int_to_ptr.vmem [resolvable:$true] %s258
          %261 = dma.hbm_to_vmem [thread:$0]  %s3, 64, %s259, [#allocation9]
        $region20: #{tpu_custom_call.1} parent=11 // pred_fallthru
          _
        // Predicated region
        $region21: #{tpu_custom_call.1} parent=11 // pred_check
          %p262 = pneg %p155
        $region22: #{tpu_custom_call.1} parent=11 // pred_check_branch
          %264 = sbr.rel (%p262) target = $region24
        $region23: #{tpu_custom_call.1} parent=11 // pred_region
          %s266 = ssub.s32 16, 16
          %267 = vsyncadd [#allocation9], %s266
          %s269 = sshll.u32 [#allocation10], 4
          %s270 = int_to_ptr.vmem [resolvable:$true] %s269
          %272 = dma.hbm_to_vmem [thread:$0]  %s4, 16, %s270, [#allocation9]
        $region24: #{tpu_custom_call.1} parent=11 // pred_fallthru
          _
        // Predicated region
        $region25: #{tpu_custom_call.1} parent=11 // pred_check
          %p273 = pneg %p176
        $region26: #{tpu_custom_call.1} parent=11 // pred_check_branch
          %275 = sbr.rel (%p273) target = $region28
        $region27: #{tpu_custom_call.1} parent=11 // pred_region
          %s277 = ssub.s32 16, 16
          %278 = vsyncadd [#allocation12], %s277
          %s280 = sshll.u32 [#allocation11], 4
          %s281 = int_to_ptr.vmem [resolvable:$true] %s280
          %283 = dma.hbm_to_vmem [thread:$0]  %s5, 16, %s281, [#allocation12]
        $region28: #{tpu_custom_call.1} parent=11 // pred_fallthru
          _
        // Predicated region
        $region29: #{tpu_custom_call.1} parent=11 // pred_check
          %p284 = pneg %p197
        $region30: #{tpu_custom_call.1} parent=11 // pred_check_branch
          %286 = sbr.rel (%p284) target = $region32
        $region31: #{tpu_custom_call.1} parent=11 // pred_region
          %s288 = ssub.s32 16, 16
          %289 = vsyncadd [#allocation12], %s288
          %s291 = sshll.u32 [#allocation13], 4
          %s292 = int_to_ptr.vmem [resolvable:$true] %s291
          %294 = dma.hbm_to_vmem [thread:$0]  %s6, 16, %s292, [#allocation12]
        $region32: #{tpu_custom_call.1} parent=11 // pred_fallthru
          _
      $region12: #{tpu_custom_call.1} parent=5 // pred_fallthru
        _
      %p295 = scmp.lt.s32.totalorder %s24, 4
      // Predicated region
      $region33: #{tpu_custom_call.1} parent=5 // pred_check
        %p296 = pneg %p295
      $region34: #{tpu_custom_call.1} parent=5 // pred_check_branch
        %298 = sbr.rel (%p296) target = $region36
      $region35: #{tpu_custom_call.1} parent=5 // pred_region
        // Predicated region
        $region37: #{tpu_custom_call.1} parent=35 // pred_check
          %p299 = pneg %p58
        $region38: #{tpu_custom_call.1} parent=35 // pred_check_branch
          %301 = sbr.rel (%p299) target = $region40
        $region39: #{tpu_custom_call.1} parent=35 // pred_region
          %s302 = sand.u32 %s48, 1
          %s303 = scalar_lea.sflag [#allocation3], %s302
          %s304 = sand.u32 %s48, 1
          %s305 = smul.addr %s304, 192
          %s306 = scalar_lea.vmem [#allocation2], %s305
          %s307 = smul.u32 8, %s32
          %s309 = ssub.s32 3072, 3072
          %310 = vsyncadd %s303, %s309
          %s311 = smul.addr %s307, 3
          %s312 = smul.addr %s31, 48
          %s313 = sadd.s32 %s311, %s312
          %s314 = smul.addr %s313, 128
          %s315 = scalar_lea.hbm %s0, %s314
          %s316 = sshll.u32 %s306, 4
          %s317 = int_to_ptr.vmem [resolvable:$true] %s316
          %322 = dma.hbm_to_vmem [thread:$0]  %s315, 3072, %s317, %s303, 128, 128, 8
        $region40: #{tpu_custom_call.1} parent=35 // pred_fallthru
          _
        // Predicated region
        $region41: #{tpu_custom_call.1} parent=35 // pred_check
          %p323 = pneg %p86
        $region42: #{tpu_custom_call.1} parent=35 // pred_check_branch
          %325 = sbr.rel (%p323) target = $region44
        $region43: #{tpu_custom_call.1} parent=35 // pred_region
          %s326 = sand.u32 %s24, 1
          %s327 = scalar_lea.sflag [#allocation6], %s326
          %s328 = sand.u32 %s76, 1
          %s329 = smul.addr %s328, 48
          %s330 = scalar_lea.vmem [#allocation5], %s329
          %s332 = ssub.s32 768, 768
          %333 = vsyncadd %s327, %s332
          %s334 = smul.addr %s32, 6
          %s335 = smul.addr %s31, 12
          %s336 = sadd.s32 %s334, %s335
          %s337 = smul.addr %s336, 128
          %s338 = scalar_lea.hbm %s1, %s337
          %s339 = sshll.u32 %s330, 4
          %s340 = int_to_ptr.vmem [resolvable:$true] %s339
          %345 = dma.hbm_to_vmem [thread:$0]  %s338, 768, %s340, %s327, 128, 128, 8
        $region44: #{tpu_custom_call.1} parent=35 // pred_fallthru
          _
      $region36: #{tpu_custom_call.1} parent=5 // pred_fallthru
        _
      %p346 = scmp.le.s32.totalorder 1, %s24
      %p347 = scmp.lt.s32.totalorder %s24, 5
      %p348 = pnand %p346, %p347
      %p349 = pneg %p348
      // Predicated region
      $region45: #{tpu_custom_call.1} parent=5 // pred_check
        _
      $region46: #{tpu_custom_call.1} parent=5 // pred_check_branch
        %351 = sbr.rel (%p348) target = $region48
      $region47: #{tpu_custom_call.1} parent=5 // pred_region
        %s352 = ssub.s32 %s24, 1
        %s353 = sand.u32 %s51, 1
        %s354 = scalar_lea.sflag [#allocation3], %s353
        %s355 = sand.u32 %s51, 1
        %s356 = smul.addr %s355, 192
        %s357 = scalar_lea.vmem [#allocation2], %s356
        // Predicated region
        $region49: #{tpu_custom_call.1} parent=47 // pred_check
          %p358 = pneg %p64
        $region50: #{tpu_custom_call.1} parent=47 // pred_check_branch
          %360 = sbr.rel (%p358) target = $region52
        $region51: #{tpu_custom_call.1} parent=47 // pred_region
          %361 = dma.done %s354, 3072
        $region52: #{tpu_custom_call.1} parent=47 // pred_fallthru
          _
        %s362 = sand.u32 %s29, 1
        %s363 = scalar_lea.sflag [#allocation6], %s362
        %s364 = sand.u32 %s79, 1
        %s365 = smul.addr %s364, 48
        %s366 = scalar_lea.vmem [#allocation5], %s365
        // Predicated region
        $region53: #{tpu_custom_call.1} parent=47 // pred_check
          %p367 = pneg %p92
        $region54: #{tpu_custom_call.1} parent=47 // pred_check_branch
          %369 = sbr.rel (%p367) target = $region56
        $region55: #{tpu_custom_call.1} parent=47 // pred_region
          %370 = dma.done %s363, 768
        $region56: #{tpu_custom_call.1} parent=47 // pred_fallthru
          _
        // Predicated region
        $region57: #{tpu_custom_call.1} parent=47 // pred_check
          %p371 = pneg %p113
        $region58: #{tpu_custom_call.1} parent=47 // pred_check_branch
          %373 = sbr.rel (%p371) target = $region60
        $region59: #{tpu_custom_call.1} parent=47 // pred_region
          %374 = dma.done [#allocation6], 64
        $region60: #{tpu_custom_call.1} parent=47 // pred_fallthru
          _
        // Predicated region
        $region61: #{tpu_custom_call.1} parent=47 // pred_check
          %p375 = pneg %p134
        $region62: #{tpu_custom_call.1} parent=47 // pred_check_branch
          %377 = sbr.rel (%p375) target = $region64
        $region63: #{tpu_custom_call.1} parent=47 // pred_region
          %378 = dma.done [#allocation9], 64
        $region64: #{tpu_custom_call.1} parent=47 // pred_fallthru
          _
        // Predicated region
        $region65: #{tpu_custom_call.1} parent=47 // pred_check
          %p379 = pneg %p155
        $region66: #{tpu_custom_call.1} parent=47 // pred_check_branch
          %381 = sbr.rel (%p379) target = $region68
        $region67: #{tpu_custom_call.1} parent=47 // pred_region
          %382 = dma.done [#allocation9], 16
        $region68: #{tpu_custom_call.1} parent=47 // pred_fallthru
          _
        // Predicated region
        $region69: #{tpu_custom_call.1} parent=47 // pred_check
          %p383 = pneg %p176
        $region70: #{tpu_custom_call.1} parent=47 // pred_check_branch
          %385 = sbr.rel (%p383) target = $region72
        $region71: #{tpu_custom_call.1} parent=47 // pred_region
          %386 = dma.done [#allocation12], 16
        $region72: #{tpu_custom_call.1} parent=47 // pred_fallthru
          _
        // Predicated region
        $region73: #{tpu_custom_call.1} parent=47 // pred_check
          %p387 = pneg %p197
        $region74: #{tpu_custom_call.1} parent=47 // pred_check_branch
          %389 = sbr.rel (%p387) target = $region76
        $region75: #{tpu_custom_call.1} parent=47 // pred_region
          %390 = dma.done [#allocation12], 16
        $region76: #{tpu_custom_call.1} parent=47 // pred_fallthru
          _
        %s391 = sand.u32 %s51, 1
        %s392 = scalar_lea.sflag [#allocation3], %s391
        %s393 = sand.u32 %s51, 1
        %s394 = smul.addr %s393, 192
        %s395 = scalar_lea.vmem [#allocation2], %s394
        %p396 = pneg %p64
        %p397 = pneg %p61
        %s398 = sand.u32 %s29, 1
        %s399 = scalar_lea.sflag [#allocation6], %s398
        %s400 = sand.u32 %s79, 1
        %s401 = smul.addr %s400, 48
        %s402 = scalar_lea.vmem [#allocation5], %s401
        %p403 = pneg %p92
        %p404 = pneg %p89
        %p405 = pneg %p113
        %p406 = pneg %p110
        %p407 = pneg %p134
        %p408 = pneg %p131
        %p409 = pneg %p155
        %p410 = pneg %p152
        %p411 = pneg %p176
        %p412 = pneg %p173
        %p413 = pneg %p197
        %p414 = pneg %p194
        %p415 = pneg %p225
        %p416 = pneg %p222
        %s417 = sand.u32 %s212, 1
        %s418 = scalar_lea.sflag [#allocation4], %s417
        %s419 = sand.u32 %s212, 1
        %s420 = smul.addr %s419, 128
        %s421 = scalar_lea.vmem [#allocation14], %s420
        %s422 = smul.u32 8, %s34
        %s423 = smul.u32 8, %s34
        %v424 = vld [vmem:[%s357] sm:$0xff]
        %v425 = vld [vmem:[%s357 + $0x8] sm:$0xff]
        %v426 = vld [vmem:[%s357 + $0x10] sm:$0x3]
        %v427 = vld [vmem:[%s357 + $0x18] sm:$0xff]
        %v428 = vld [vmem:[%s357 + $0x20] sm:$0xff]
        %v429 = vld [vmem:[%s357 + $0x28] sm:$0x3]
        %v430 = vld [vmem:[%s357 + $0x30] sm:$0xff]
        %v431 = vld [vmem:[%s357 + $0x38] sm:$0xff]
        %v432 = vld [vmem:[%s357 + $0x40] sm:$0x3]
        %v433 = vld [vmem:[%s357 + $0x48] sm:$0xff]
        %v434 = vld [vmem:[%s357 + $0x50] sm:$0xff]
        %v435 = vld [vmem:[%s357 + $0x58] sm:$0x3]
        %v436 = vld [vmem:[%s357 + $0x60] sm:$0xff]
        %v437 = vld [vmem:[%s357 + $0x68] sm:$0xff]
        %v438 = vld [vmem:[%s357 + $0x70] sm:$0x3]
        %v439 = vld [vmem:[%s357 + $0x78] sm:$0xff]
        %v440 = vld [vmem:[%s357 + $0x80] sm:$0xff]
        %v441 = vld [vmem:[%s357 + $0x88] sm:$0x3]
        %v442 = vld [vmem:[%s357 + $0x90] sm:$0xff]
        %v443 = vld [vmem:[%s357 + $0x98] sm:$0xff]
        %v444 = vld [vmem:[%s357 + $0xa0] sm:$0x3]
        %v445 = vld [vmem:[%s357 + $0xa8] sm:$0xff]
        %v446 = vld [vmem:[%s357 + $0xb0] sm:$0xff]
        %v447 = vld [vmem:[%s357 + $0xb8] sm:$0x3]
        %v448 = vld [vmem:[%s366] sm:$0xff]
        %v449 = vld [vmem:[%s366 + $0x8] sm:$0xff]
        %v450 = vld [vmem:[%s366 + $0x10] sm:$0x3]
        %v451 = vld [vmem:[%s366 + $0x18] sm:$0xff]
        %v452 = vld [vmem:[%s366 + $0x20] sm:$0xff]
        %v453 = vld [vmem:[%s366 + $0x28] sm:$0x3]
        %v454 = vmul.f32 %v424, 2.0
        %v455 = vmul.f32 %v425, 2.0
        %v456 = vmul.f32 %v426, 2.0
        %v457 = vmul.f32 %v427, 2.0
        %v458 = vmul.f32 %v428, 2.0
        %v459 = vmul.f32 %v429, 2.0
        %v460 = vmul.f32 %v430, 2.0
        %v461 = vmul.f32 %v431, 2.0
        %v462 = vmul.f32 %v432, 2.0
        %v463 = vmul.f32 %v433, 2.0
        %v464 = vmul.f32 %v434, 2.0
        %v465 = vmul.f32 %v435, 2.0
        %v466 = vmul.f32 %v436, 2.0
        %v467 = vmul.f32 %v437, 2.0
        %v468 = vmul.f32 %v438, 2.0
        %v469 = vmul.f32 %v439, 2.0
        %v470 = vmul.f32 %v440, 2.0
        %v471 = vmul.f32 %v441, 2.0
        %v472 = vmul.f32 %v442, 2.0
        %v473 = vmul.f32 %v443, 2.0
        %v474 = vmul.f32 %v444, 2.0
        %v475 = vmul.f32 %v445, 2.0
        %v476 = vmul.f32 %v446, 2.0
        %v477 = vmul.f32 %v447, 2.0
        %v478 = vadd.f32 %v448, %v454
        %v479 = vadd.f32 %v449, %v455
        %v480 = vadd.f32 %v450, %v456
        %v481 = vadd.f32 %v424, %v457
        %v482 = vadd.f32 %v425, %v458
        %v483 = vadd.f32 %v426, %v459
        %v484 = vadd.f32 %v427, %v460
        %v485 = vadd.f32 %v428, %v461
        %v486 = vadd.f32 %v429, %v462
        %v487 = vadd.f32 %v430, %v463
        %v488 = vadd.f32 %v431, %v464
        %v489 = vadd.f32 %v432, %v465
        %v490 = vadd.f32 %v433, %v466
        %v491 = vadd.f32 %v434, %v467
        %v492 = vadd.f32 %v435, %v468
        %v493 = vadd.f32 %v436, %v469
        %v494 = vadd.f32 %v437, %v470
        %v495 = vadd.f32 %v438, %v471
        %v496 = vadd.f32 %v439, %v472
        %v497 = vadd.f32 %v440, %v473
        %v498 = vadd.f32 %v441, %v474
        %v499 = vadd.f32 %v442, %v475
        %v500 = vadd.f32 %v443, %v476
        %v501 = vadd.f32 %v444, %v477
        %v502 = vadd.f32 %v478, %v427
        %v503 = vadd.f32 %v479, %v428
        %v504 = vadd.f32 %v480, %v429
        %v505 = vadd.f32 %v481, %v430
        %v506 = vadd.f32 %v482, %v431
        %v507 = vadd.f32 %v483, %v432
        %v508 = vadd.f32 %v484, %v433
        %v509 = vadd.f32 %v485, %v434
        %v510 = vadd.f32 %v486, %v435
        %v511 = vadd.f32 %v487, %v436
        %v512 = vadd.f32 %v488, %v437
        %v513 = vadd.f32 %v489, %v438
        %v514 = vadd.f32 %v490, %v439
        %v515 = vadd.f32 %v491, %v440
        %v516 = vadd.f32 %v492, %v441
        %v517 = vadd.f32 %v493, %v442
        %v518 = vadd.f32 %v494, %v443
        %v519 = vadd.f32 %v495, %v444
        %v520 = vadd.f32 %v496, %v445
        %v521 = vadd.f32 %v497, %v446
        %v522 = vadd.f32 %v498, %v447
        %v523 = vadd.f32 %v499, %v451
        %v524 = vadd.f32 %v500, %v452
        %v525 = vadd.f32 %v501, %v453
        %v526 = vsub.f32 %v427, %v448
        %v527 = vsub.f32 %v428, %v449
        %v528 = vsub.f32 %v429, %v450
        %v529 = vsub.f32 %v430, %v424
        %v530 = vsub.f32 %v431, %v425
        %v531 = vsub.f32 %v432, %v426
        %v532 = vsub.f32 %v433, %v427
        %v533 = vsub.f32 %v434, %v428
        %v534 = vsub.f32 %v435, %v429
        %v535 = vsub.f32 %v436, %v430
        %v536 = vsub.f32 %v437, %v431
        %v537 = vsub.f32 %v438, %v432
        %v538 = vsub.f32 %v439, %v433
        %v539 = vsub.f32 %v440, %v434
        %v540 = vsub.f32 %v441, %v435
        %v541 = vsub.f32 %v442, %v436
        %v542 = vsub.f32 %v443, %v437
        %v543 = vsub.f32 %v444, %v438
        %v544 = vsub.f32 %v445, %v439
        %v545 = vsub.f32 %v446, %v440
        %v546 = vsub.f32 %v447, %v441
        %v547 = vsub.f32 %v451, %v442
        %v548 = vsub.f32 %v452, %v443
        %v549 = vsub.f32 %v453, %v444
        %vm566 = vcmask 1041408
        %v567 = vrot.slane %v502, 6
        %v568 = vrot.slane %v503, 6
        %v569 = vsel %vm566, %v567, %v568
        %v570 = vrot.slane %v505, 6
        %v571 = vrot.slane %v506, 6
        %v572 = vsel %vm566, %v570, %v571
        %v573 = vrot.slane %v508, 6
        %v574 = vrot.slane %v509, 6
        %v575 = vsel %vm566, %v573, %v574
        %v576 = vrot.slane %v511, 6
        %v577 = vrot.slane %v512, 6
        %v578 = vsel %vm566, %v576, %v577
        %v579 = vrot.slane %v514, 6
        %v580 = vrot.slane %v515, 6
        %v581 = vsel %vm566, %v579, %v580
        %v582 = vrot.slane %v517, 6
        %v583 = vrot.slane %v518, 6
        %v584 = vsel %vm566, %v582, %v583
        %v585 = vrot.slane %v520, 6
        %v586 = vrot.slane %v521, 6
        %v587 = vsel %vm566, %v585, %v586
        %v588 = vrot.slane %v523, 6
        %v589 = vrot.slane %v524, 6
        %v590 = vsel %vm566, %v588, %v589
        %v615 = vsub.f32 %v502, %v567
        %v616 = vsub.f32 %v503, %v569
        %v617 = vsub.f32 %v504, %v568
        %v618 = vsub.f32 %v505, %v570
        %v619 = vsub.f32 %v506, %v572
        %v620 = vsub.f32 %v507, %v571
        %v621 = vsub.f32 %v508, %v573
        %v622 = vsub.f32 %v509, %v575
        %v623 = vsub.f32 %v510, %v574
        %v624 = vsub.f32 %v511, %v576
        %v625 = vsub.f32 %v512, %v578
        %v626 = vsub.f32 %v513, %v577
        %v627 = vsub.f32 %v514, %v579
        %v628 = vsub.f32 %v515, %v581
        %v629 = vsub.f32 %v516, %v580
        %v630 = vsub.f32 %v517, %v582
        %v631 = vsub.f32 %v518, %v584
        %v632 = vsub.f32 %v519, %v583
        %v633 = vsub.f32 %v520, %v585
        %v634 = vsub.f32 %v521, %v587
        %v635 = vsub.f32 %v522, %v586
        %v636 = vsub.f32 %v523, %v588
        %v637 = vsub.f32 %v524, %v590
        %v638 = vsub.f32 %v525, %v589
        %v639 = vmul.f32 %v526, 2.0
        %v640 = vmul.f32 %v527, 2.0
        %v641 = vmul.f32 %v528, 2.0
        %v642 = vmul.f32 %v529, 2.0
        %v643 = vmul.f32 %v530, 2.0
        %v644 = vmul.f32 %v531, 2.0
        %v645 = vmul.f32 %v532, 2.0
        %v646 = vmul.f32 %v533, 2.0
        %v647 = vmul.f32 %v534, 2.0
        %v648 = vmul.f32 %v535, 2.0
        %v649 = vmul.f32 %v536, 2.0
        %v650 = vmul.f32 %v537, 2.0
        %v651 = vmul.f32 %v538, 2.0
        %v652 = vmul.f32 %v539, 2.0
        %v653 = vmul.f32 %v540, 2.0
        %v654 = vmul.f32 %v541, 2.0
        %v655 = vmul.f32 %v542, 2.0
        %v656 = vmul.f32 %v543, 2.0
        %v657 = vmul.f32 %v544, 2.0
        %v658 = vmul.f32 %v545, 2.0
        %v659 = vmul.f32 %v546, 2.0
        %v660 = vmul.f32 %v547, 2.0
        %v661 = vmul.f32 %v548, 2.0
        %v662 = vmul.f32 %v549, 2.0
        %vm687 = vcmask 1046528
        %v688 = vrot.slane %v639, 1
        %v689 = vrot.slane %v640, 1
        %v690 = vsel %vm687, %v688, %v689
        %v691 = vrot.slane %v641, 1
        %v692 = vsel %vm687, %v689, %v691
        %v693 = vrot.slane %v642, 1
        %v694 = vrot.slane %v643, 1
        %v695 = vsel %vm687, %v693, %v694
        %v696 = vrot.slane %v644, 1
        %v697 = vsel %vm687, %v694, %v696
        %v698 = vrot.slane %v645, 1
        %v699 = vrot.slane %v646, 1
        %v700 = vsel %vm687, %v698, %v699
        %v701 = vrot.slane %v647, 1
        %v702 = vsel %vm687, %v699, %v701
        %v703 = vrot.slane %v648, 1
        %v704 = vrot.slane %v649, 1
        %v705 = vsel %vm687, %v703, %v704
        %v706 = vrot.slane %v650, 1
        %v707 = vsel %vm687, %v704, %v706
        %v708 = vrot.slane %v651, 1
        %v709 = vrot.slane %v652, 1
        %v710 = vsel %vm687, %v708, %v709
        %v711 = vrot.slane %v653, 1
        %v712 = vsel %vm687, %v709, %v711
        %v713 = vrot.slane %v654, 1
        %v714 = vrot.slane %v655, 1
        %v715 = vsel %vm687, %v713, %v714
        %v716 = vrot.slane %v656, 1
        %v717 = vsel %vm687, %v714, %v716
        %v718 = vrot.slane %v657, 1
        %v719 = vrot.slane %v658, 1
        %v720 = vsel %vm687, %v718, %v719
        %v721 = vrot.slane %v659, 1
        %v722 = vsel %vm687, %v719, %v721
        %v723 = vrot.slane %v660, 1
        %v724 = vrot.slane %v661, 1
        %v725 = vsel %vm687, %v723, %v724
        %v726 = vrot.slane %v662, 1
        %v727 = vsel %vm687, %v724, %v726
        %v744 = vadd.f32 %v526, %v690
        %v745 = vadd.f32 %v527, %v692
        %v746 = vadd.f32 %v529, %v695
        %v747 = vadd.f32 %v530, %v697
        %v748 = vadd.f32 %v532, %v700
        %v749 = vadd.f32 %v533, %v702
        %v750 = vadd.f32 %v535, %v705
        %v751 = vadd.f32 %v536, %v707
        %v752 = vadd.f32 %v538, %v710
        %v753 = vadd.f32 %v539, %v712
        %v754 = vadd.f32 %v541, %v715
        %v755 = vadd.f32 %v542, %v717
        %v756 = vadd.f32 %v544, %v720
        %v757 = vadd.f32 %v545, %v722
        %v758 = vadd.f32 %v547, %v725
        %v759 = vadd.f32 %v548, %v727
        %vm784 = vcmask 1045504
        %v785 = vrot.slane %v526, 2
        %v786 = vrot.slane %v527, 2
        %v787 = vsel %vm784, %v785, %v786
        %v788 = vrot.slane %v528, 2
        %v789 = vsel %vm784, %v786, %v788
        %v790 = vrot.slane %v529, 2
        %v791 = vrot.slane %v530, 2
        %v792 = vsel %vm784, %v790, %v791
        %v793 = vrot.slane %v531, 2
        %v794 = vsel %vm784, %v791, %v793
        %v795 = vrot.slane %v532, 2
        %v796 = vrot.slane %v533, 2
        %v797 = vsel %vm784, %v795, %v796
        %v798 = vrot.slane %v534, 2
        %v799 = vsel %vm784, %v796, %v798
        %v800 = vrot.slane %v535, 2
        %v801 = vrot.slane %v536, 2
        %v802 = vsel %vm784, %v800, %v801
        %v803 = vrot.slane %v537, 2
        %v804 = vsel %vm784, %v801, %v803
        %v805 = vrot.slane %v538, 2
        %v806 = vrot.slane %v539, 2
        %v807 = vsel %vm784, %v805, %v806
        %v808 = vrot.slane %v540, 2
        %v809 = vsel %vm784, %v806, %v808
        %v810 = vrot.slane %v541, 2
        %v811 = vrot.slane %v542, 2
        %v812 = vsel %vm784, %v810, %v811
        %v813 = vrot.slane %v543, 2
        %v814 = vsel %vm784, %v811, %v813
        %v815 = vrot.slane %v544, 2
        %v816 = vrot.slane %v545, 2
        %v817 = vsel %vm784, %v815, %v816
        %v818 = vrot.slane %v546, 2
        %v819 = vsel %vm784, %v816, %v818
        %v820 = vrot.slane %v547, 2
        %v821 = vrot.slane %v548, 2
        %v822 = vsel %vm784, %v820, %v821
        %v823 = vrot.slane %v549, 2
        %v824 = vsel %vm784, %v821, %v823
        %v841 = vadd.f32 %v744, %v787
        %v842 = vadd.f32 %v745, %v789
        %v843 = vadd.f32 %v746, %v792
        %v844 = vadd.f32 %v747, %v794
        %v845 = vadd.f32 %v748, %v797
        %v846 = vadd.f32 %v749, %v799
        %v847 = vadd.f32 %v750, %v802
        %v848 = vadd.f32 %v751, %v804
        %v849 = vadd.f32 %v752, %v807
        %v850 = vadd.f32 %v753, %v809
        %v851 = vadd.f32 %v754, %v812
        %v852 = vadd.f32 %v755, %v814
        %v853 = vadd.f32 %v756, %v817
        %v854 = vadd.f32 %v757, %v819
        %v855 = vadd.f32 %v758, %v822
        %v856 = vadd.f32 %v759, %v824
        %v881 = vrot.slane %v615, 2
        %v882 = vrot.slane %v616, 2
        %v883 = vsel %vm784, %v881, %v882
        %v884 = vrot.slane %v617, 2
        %v885 = vsel %vm784, %v882, %v884
        %v886 = vrot.slane %v618, 2
        %v887 = vrot.slane %v619, 2
        %v888 = vsel %vm784, %v886, %v887
        %v889 = vrot.slane %v620, 2
        %v890 = vsel %vm784, %v887, %v889
        %v891 = vrot.slane %v621, 2
        %v892 = vrot.slane %v622, 2
        %v893 = vsel %vm784, %v891, %v892
        %v894 = vrot.slane %v623, 2
        %v895 = vsel %vm784, %v892, %v894
        %v896 = vrot.slane %v624, 2
        %v897 = vrot.slane %v625, 2
        %v898 = vsel %vm784, %v896, %v897
        %v899 = vrot.slane %v626, 2
        %v900 = vsel %vm784, %v897, %v899
        %v901 = vrot.slane %v627, 2
        %v902 = vrot.slane %v628, 2
        %v903 = vsel %vm784, %v901, %v902
        %v904 = vrot.slane %v629, 2
        %v905 = vsel %vm784, %v902, %v904
        %v906 = vrot.slane %v630, 2
        %v907 = vrot.slane %v631, 2
        %v908 = vsel %vm784, %v906, %v907
        %v909 = vrot.slane %v632, 2
        %v910 = vsel %vm784, %v907, %v909
        %v911 = vrot.slane %v633, 2
        %v912 = vrot.slane %v634, 2
        %v913 = vsel %vm784, %v911, %v912
        %v914 = vrot.slane %v635, 2
        %v915 = vsel %vm784, %v912, %v914
        %v916 = vrot.slane %v636, 2
        %v917 = vrot.slane %v637, 2
        %v918 = vsel %vm784, %v916, %v917
        %v919 = vrot.slane %v638, 2
        %v920 = vsel %vm784, %v917, %v919
        %v921 = vld [vmem:[#allocation7] sm:$0xf]
        %v922 = vld [vmem:[#allocation8] sm:$0xf]
        %vm923 = vcmask 31744
        %v925 = vsel %vm923, %v841, 0
        %v928 = vsel %vm923, %v842, 0
        %v931 = vsel %vm923, %v843, 0
        %v934 = vsel %vm923, %v844, 0
        %v937 = vsel %vm923, %v845, 0
        %v940 = vsel %vm923, %v846, 0
        %v943 = vsel %vm923, %v847, 0
        %v946 = vsel %vm923, %v848, 0
        %v949 = vsel %vm923, %v849, 0
        %v952 = vsel %vm923, %v850, 0
        %v955 = vsel %vm923, %v851, 0
        %v958 = vsel %vm923, %v852, 0
        %v961 = vsel %vm923, %v853, 0
        %v964 = vsel %vm923, %v854, 0
        %v967 = vsel %vm923, %v855, 0
        %v970 = vsel %vm923, %v856, 0
        %vm972 = vcmask 1043456
        %v974 = vsel %vm972, %v922, 0
        %976 = vmatprep.subr.mxu0 0.0
        %977 = vmatpush1.msra.mxu0 %v974
        %978 = vmatprep.subr.mxu0 0.0
        %979 = vmatpush1.msra.mxu0 0.0
        %980 = vmatprep.subr.mxu0 0.0
        %981 = vmatpush1.msra.mxu0 0.0
        %982 = vmatprep.subr.mxu0 0.0
        %983 = vmatpush1.msra.mxu0 0.0
        %984 = vmatprep.subr.mxu0 0.0
        %985 = vmatpush1.msra.mxu0 0.0
        %986 = vmatprep.subr.mxu0 0.0
        %987 = vmatpush1.msra.mxu0 0.0
        %988 = vmatprep.subr.mxu0 0.0
        %989 = vmatpush1.msra.mxu0 0.0
        %990 = vmatprep.subr.mxu0 0.0
        %991 = vmatpush1.msra.mxu0 0.0
        %992 = vmatprep.subr.mxu0 0.0
        %993 = vmatpush1.msra.mxu0 0.0
        %994 = vmatprep.subr.mxu0 0.0
        %995 = vmatpush1.msra.mxu0 0.0
        %996 = vmatprep.subr.mxu0 0.0
        %997 = vmatpush1.msra.mxu0 0.0
        %998 = vmatprep.subr.mxu0 0.0
        %999 = vmatpush1.msra.mxu0 0.0
        %1000 = vmatprep.subr.mxu0 0.0
        %1001 = vmatpush1.msra.mxu0 0.0
        %1002 = vmatprep.subr.mxu0 0.0
        %1003 = vmatpush1.msra.mxu0 0.0
        %1004 = vmatprep.subr.mxu0 0.0
        %1005 = vmatpush1.msra.mxu0 0.0
        %1006 = vmatprep.subr.mxu0 0.0
        %1007 = vmatpush1.msra.mxu0 0.0
        %1008 = vmatprep.subr.mxu0 0.0
        %1009 = vmatpush1.msra.mxu0 0.0
        %1010 = vmatprep.subr.mxu0 0.0
        %1011 = vmatpush1.msra.mxu0 0.0
        %1012 = vmatprep.subr.mxu0 0.0
        %1013 = vmatpush1.msra.mxu0 0.0
        %1014 = vmatprep.subr.mxu0 0.0
        %1015 = vmatpush1.msra.mxu0 0.0
        %1016 = vmatprep.subr.mxu0 0.0
        %1017 = vmatpush1.msra.mxu0 0.0
        %1018 = vmatprep.subr.mxu0 0.0
        %1019 = vmatpush1.msra.mxu0 0.0
        %1020 = vmatprep.subr.mxu0 0.0
        %1021 = vmatpush1.msra.mxu0 0.0
        %1022 = vmatprep.subr.mxu0 0.0
        %1023 = vmatpush1.msra.mxu0 0.0
        %1024 = vmatprep.subr.mxu0 0.0
        %1025 = vmatpush1.msra.mxu0 0.0
        %1026 = vmatprep.subr.mxu0 0.0
        %1027 = vmatpush1.msra.mxu0 0.0
        %1028 = vmatprep.subr.mxu0 0.0
        %1029 = vmatpush1.msra.mxu0 0.0
        %1030 = vmatprep.subr.mxu0 0.0
        %1031 = vmatpush1.msra.mxu0 0.0
        %1032 = vmatprep.subr.mxu0 0.0
        %1033 = vmatpush1.msra.mxu0 0.0
        %1034 = vmatprep.subr.mxu0 0.0
        %1035 = vmatpush1.msra.mxu0 0.0
        %1036 = vmatprep.subr.mxu0 0.0
        %1037 = vmatpush1.msra.mxu0 0.0
        %1038 = vmatprep.subr.mxu0 0.0
        %1039 = vmatpush1.msra.mxu0 0.0
        %1040 = vmatprep.mubr.f32.mxu0 0.0
        %1041 = vmatmul.mubr.f32.gmra.mrb[0].mxu0 %v925
        %v1042 = vpop.f32.mrb[0].mxu0
        %v1043 = vadd.f32 0.0, %v1042
        %v1044 = vpop.f32.mrb[0].mxu0
        %1045 = vmatprep.mubr.f32.mxu0 0.0
        %1046 = vmatmul.mubr.f32.gmra.mrb[0].mxu0 %v928
        %v1047 = vpop.f32.mrb[0].mxu0
        %v1048 = vadd.f32 0.0, %v1047
        %v1049 = vpop.f32.mrb[0].mxu0
        %1050 = vmatprep.mubr.f32.mxu0 0.0
        %1051 = vmatmul.mubr.f32.gmra.mrb[0].mxu0 %v931
        %v1052 = vpop.f32.mrb[0].mxu0
        %v1053 = vadd.f32 0.0, %v1052
        %v1054 = vpop.f32.mrb[0].mxu0
        %1055 = vmatprep.mubr.f32.mxu0 0.0
        %1056 = vmatmul.mubr.f32.gmra.mrb[0].mxu0 %v934
        %v1057 = vpop.f32.mrb[0].mxu0
        %v1058 = vadd.f32 0.0, %v1057
        %v1059 = vpop.f32.mrb[0].mxu0
        %1060 = vmatprep.mubr.f32.mxu0 0.0
        %1061 = vmatmul.mubr.f32.gmra.mrb[0].mxu0 %v937
        %v1062 = vpop.f32.mrb[0].mxu0
        %v1063 = vadd.f32 0.0, %v1062
        %v1064 = vpop.f32.mrb[0].mxu0
        %1065 = vmatprep.mubr.f32.mxu0 0.0
        %1066 = vmatmul.mubr.f32.gmra.mrb[0].mxu0 %v940
        %v1067 = vpop.f32.mrb[0].mxu0
        %v1068 = vadd.f32 0.0, %v1067
        %v1069 = vpop.f32.mrb[0].mxu0
        %1070 = vmatprep.mubr.f32.mxu0 0.0
        %1071 = vmatmul.mubr.f32.gmra.mrb[0].mxu0 %v943
        %v1072 = vpop.f32.mrb[0].mxu0
        %v1073 = vadd.f32 0.0, %v1072
        %v1074 = vpop.f32.mrb[0].mxu0
        %1075 = vmatprep.mubr.f32.mxu0 0.0
        %1076 = vmatmul.mubr.f32.gmra.mrb[0].mxu0 %v946
        %v1077 = vpop.f32.mrb[0].mxu0
        %v1078 = vadd.f32 0.0, %v1077
        %v1079 = vpop.f32.mrb[0].mxu0
        %1080 = vmatprep.mubr.f32.mxu0 0.0
        %1081 = vmatmul.mubr.f32.gmra.mrb[0].mxu0 %v949
        %v1082 = vpop.f32.mrb[0].mxu0
        %v1083 = vadd.f32 0.0, %v1082
        %v1084 = vpop.f32.mrb[0].mxu0
        %1085 = vmatprep.mubr.f32.mxu0 0.0
        %1086 = vmatmul.mubr.f32.gmra.mrb[0].mxu0 %v952
        %v1087 = vpop.f32.mrb[0].mxu0
        %v1088 = vadd.f32 0.0, %v1087
        %v1089 = vpop.f32.mrb[0].mxu0
        %1090 = vmatprep.mubr.f32.mxu0 0.0
        %1091 = vmatmul.mubr.f32.gmra.mrb[0].mxu0 %v955
        %v1092 = vpop.f32.mrb[0].mxu0
        %v1093 = vadd.f32 0.0, %v1092
        %v1094 = vpop.f32.mrb[0].mxu0
        %1095 = vmatprep.mubr.f32.mxu0 0.0
        %1096 = vmatmul.mubr.f32.gmra.mrb[0].mxu0 %v958
        %v1097 = vpop.f32.mrb[0].mxu0
        %v1098 = vadd.f32 0.0, %v1097
        %v1099 = vpop.f32.mrb[0].mxu0
        %1100 = vmatprep.mubr.f32.mxu0 0.0
        %1101 = vmatmul.mubr.f32.gmra.mrb[0].mxu0 %v961
        %v1102 = vpop.f32.mrb[0].mxu0
        %v1103 = vadd.f32 0.0, %v1102
        %v1104 = vpop.f32.mrb[0].mxu0
        %1105 = vmatprep.mubr.f32.mxu0 0.0
        %1106 = vmatmul.mubr.f32.gmra.mrb[0].mxu0 %v964
        %v1107 = vpop.f32.mrb[0].mxu0
        %v1108 = vadd.f32 0.0, %v1107
        %v1109 = vpop.f32.mrb[0].mxu0
        %1110 = vmatprep.mubr.f32.mxu0 0.0
        %1111 = vmatmul.mubr.f32.gmra.mrb[0].mxu0 %v967
        %v1112 = vpop.f32.mrb[0].mxu0
        %v1113 = vadd.f32 0.0, %v1112
        %v1114 = vpop.f32.mrb[0].mxu0
        %1115 = vmatprep.mubr.f32.mxu0 0.0
        %1116 = vmatmul.mubr.f32.gmra.mrb[0].mxu0 %v970
        %v1117 = vpop.f32.mrb[0].mxu0
        %v1118 = vadd.f32 0.0, %v1117
        %v1119 = vpop.f32.mrb[0].mxu0
        %1120 = vdwg.mxu0
        %v1121 = vsel %vm923, %v883, 0
        %v1123 = vsel %vm923, %v885, 0
        %v1125 = vsel %vm923, %v888, 0
        %v1127 = vsel %vm923, %v890, 0
        %v1129 = vsel %vm923, %v893, 0
        %v1131 = vsel %vm923, %v895, 0
        %v1133 = vsel %vm923, %v898, 0
        %v1135 = vsel %vm923, %v900, 0
        %v1137 = vsel %vm923, %v903, 0
        %v1139 = vsel %vm923, %v905, 0
        %v1141 = vsel %vm923, %v908, 0
        %v1143 = vsel %vm923, %v910, 0
        %v1145 = vsel %vm923, %v913, 0
        %v1147 = vsel %vm923, %v915, 0
        %v1149 = vsel %vm923, %v918, 0
        %v1151 = vsel %vm923, %v920, 0
        %v1154 = vsel %vm972, %v921, 0
        %1156 = vmatprep.subr.mxu0 0.0
        %1157 = vmatpush1.msra.mxu0 %v1154
        %1158 = vmatprep.subr.mxu0 0.0
        %1159 = vmatpush1.msra.mxu0 0.0
        %1160 = vmatprep.subr.mxu0 0.0
        %1161 = vmatpush1.msra.mxu0 0.0
        %1162 = vmatprep.subr.mxu0 0.0
        %1163 = vmatpush1.msra.mxu0 0.0
        %1164 = vmatprep.subr.mxu0 0.0
        %1165 = vmatpush1.msra.mxu0 0.0
        %1166 = vmatprep.subr.mxu0 0.0
        %1167 = vmatpush1.msra.mxu0 0.0
        %1168 = vmatprep.subr.mxu0 0.0
        %1169 = vmatpush1.msra.mxu0 0.0
        %1170 = vmatprep.subr.mxu0 0.0
        %1171 = vmatpush1.msra.mxu0 0.0
        %1172 = vmatprep.subr.mxu0 0.0
        %1173 = vmatpush1.msra.mxu0 0.0
        %1174 = vmatprep.subr.mxu0 0.0
        %1175 = vmatpush1.msra.mxu0 0.0
        %1176 = vmatprep.subr.mxu0 0.0
        %1177 = vmatpush1.msra.mxu0 0.0
        %1178 = vmatprep.subr.mxu0 0.0
        %1179 = vmatpush1.msra.mxu0 0.0
        %1180 = vmatprep.subr.mxu0 0.0
        %1181 = vmatpush1.msra.mxu0 0.0
        %1182 = vmatprep.subr.mxu0 0.0
        %1183 = vmatpush1.msra.mxu0 0.0
        %1184 = vmatprep.subr.mxu0 0.0
        %1185 = vmatpush1.msra.mxu0 0.0
        %1186 = vmatprep.subr.mxu0 0.0
        %1187 = vmatpush1.msra.mxu0 0.0
        %1188 = vmatprep.subr.mxu0 0.0
        %1189 = vmatpush1.msra.mxu0 0.0
        %1190 = vmatprep.subr.mxu0 0.0
        %1191 = vmatpush1.msra.mxu0 0.0
        %1192 = vmatprep.subr.mxu0 0.0
        %1193 = vmatpush1.msra.mxu0 0.0
        %1194 = vmatprep.subr.mxu0 0.0
        %1195 = vmatpush1.msra.mxu0 0.0
        %1196 = vmatprep.subr.mxu0 0.0
        %1197 = vmatpush1.msra.mxu0 0.0
        %1198 = vmatprep.subr.mxu0 0.0
        %1199 = vmatpush1.msra.mxu0 0.0
        %1200 = vmatprep.subr.mxu0 0.0
        %1201 = vmatpush1.msra.mxu0 0.0
        %1202 = vmatprep.subr.mxu0 0.0
        %1203 = vmatpush1.msra.mxu0 0.0
        %1204 = vmatprep.subr.mxu0 0.0
        %1205 = vmatpush1.msra.mxu0 0.0
        %1206 = vmatprep.subr.mxu0 0.0
        %1207 = vmatpush1.msra.mxu0 0.0
        %1208 = vmatprep.subr.mxu0 0.0
        %1209 = vmatpush1.msra.mxu0 0.0
        %1210 = vmatprep.subr.mxu0 0.0
        %1211 = vmatpush1.msra.mxu0 0.0
        %1212 = vmatprep.subr.mxu0 0.0
        %1213 = vmatpush1.msra.mxu0 0.0
        %1214 = vmatprep.subr.mxu0 0.0
        %1215 = vmatpush1.msra.mxu0 0.0
        %1216 = vmatprep.subr.mxu0 0.0
        %1217 = vmatpush1.msra.mxu0 0.0
        %1218 = vmatprep.subr.mxu0 0.0
        %1219 = vmatpush1.msra.mxu0 0.0
        %1220 = vmatprep.mubr.f32.mxu0 0.0
        %1221 = vmatmul.mubr.f32.gmra.mrb[0].mxu0 %v1121
        %v1222 = vpop.f32.mrb[0].mxu0
        %v1223 = vadd.f32 %v1043, %v1222
        %v1224 = vpop.f32.mrb[0].mxu0
        %1225 = vmatprep.mubr.f32.mxu0 0.0
        %1226 = vmatmul.mubr.f32.gmra.mrb[0].mxu0 %v1123
        %v1227 = vpop.f32.mrb[0].mxu0
        %v1228 = vadd.f32 %v1048, %v1227
        %v1229 = vpop.f32.mrb[0].mxu0
        %1230 = vmatprep.mubr.f32.mxu0 0.0
        %1231 = vmatmul.mubr.f32.gmra.mrb[0].mxu0 %v1125
        %v1232 = vpop.f32.mrb[0].mxu0
        %v1233 = vadd.f32 %v1053, %v1232
        %v1234 = vpop.f32.mrb[0].mxu0
        %1235 = vmatprep.mubr.f32.mxu0 0.0
        %1236 = vmatmul.mubr.f32.gmra.mrb[0].mxu0 %v1127
        %v1237 = vpop.f32.mrb[0].mxu0
        %v1238 = vadd.f32 %v1058, %v1237
        %v1239 = vpop.f32.mrb[0].mxu0
        %1240 = vmatprep.mubr.f32.mxu0 0.0
        %1241 = vmatmul.mubr.f32.gmra.mrb[0].mxu0 %v1129
        %v1242 = vpop.f32.mrb[0].mxu0
        %v1243 = vadd.f32 %v1063, %v1242
        %v1244 = vpop.f32.mrb[0].mxu0
        %1245 = vmatprep.mubr.f32.mxu0 0.0
        %1246 = vmatmul.mubr.f32.gmra.mrb[0].mxu0 %v1131
        %v1247 = vpop.f32.mrb[0].mxu0
        %v1248 = vadd.f32 %v1068, %v1247
        %v1249 = vpop.f32.mrb[0].mxu0
        %1250 = vmatprep.mubr.f32.mxu0 0.0
        %1251 = vmatmul.mubr.f32.gmra.mrb[0].mxu0 %v1133
        %v1252 = vpop.f32.mrb[0].mxu0
        %v1253 = vadd.f32 %v1073, %v1252
        %v1254 = vpop.f32.mrb[0].mxu0
        %1255 = vmatprep.mubr.f32.mxu0 0.0
        %1256 = vmatmul.mubr.f32.gmra.mrb[0].mxu0 %v1135
        %v1257 = vpop.f32.mrb[0].mxu0
        %v1258 = vadd.f32 %v1078, %v1257
        %v1259 = vpop.f32.mrb[0].mxu0
        %1260 = vmatprep.mubr.f32.mxu0 0.0
        %1261 = vmatmul.mubr.f32.gmra.mrb[0].mxu0 %v1137
        %v1262 = vpop.f32.mrb[0].mxu0
        %v1263 = vadd.f32 %v1083, %v1262
        %v1264 = vpop.f32.mrb[0].mxu0
        %1265 = vmatprep.mubr.f32.mxu0 0.0
        %1266 = vmatmul.mubr.f32.gmra.mrb[0].mxu0 %v1139
        %v1267 = vpop.f32.mrb[0].mxu0
        %v1268 = vadd.f32 %v1088, %v1267
        %v1269 = vpop.f32.mrb[0].mxu0
        %1270 = vmatprep.mubr.f32.mxu0 0.0
        %1271 = vmatmul.mubr.f32.gmra.mrb[0].mxu0 %v1141
        %v1272 = vpop.f32.mrb[0].mxu0
        %v1273 = vadd.f32 %v1093, %v1272
        %v1274 = vpop.f32.mrb[0].mxu0
        %1275 = vmatprep.mubr.f32.mxu0 0.0
        %1276 = vmatmul.mubr.f32.gmra.mrb[0].mxu0 %v1143
        %v1277 = vpop.f32.mrb[0].mxu0
        %v1278 = vadd.f32 %v1098, %v1277
        %v1279 = vpop.f32.mrb[0].mxu0
        %1280 = vmatprep.mubr.f32.mxu0 0.0
        %1281 = vmatmul.mubr.f32.gmra.mrb[0].mxu0 %v1145
        %v1282 = vpop.f32.mrb[0].mxu0
        %v1283 = vadd.f32 %v1103, %v1282
        %v1284 = vpop.f32.mrb[0].mxu0
        %1285 = vmatprep.mubr.f32.mxu0 0.0
        %1286 = vmatmul.mubr.f32.gmra.mrb[0].mxu0 %v1147
        %v1287 = vpop.f32.mrb[0].mxu0
        %v1288 = vadd.f32 %v1108, %v1287
        %v1289 = vpop.f32.mrb[0].mxu0
        %1290 = vmatprep.mubr.f32.mxu0 0.0
        %1291 = vmatmul.mubr.f32.gmra.mrb[0].mxu0 %v1149
        %v1292 = vpop.f32.mrb[0].mxu0
        %v1293 = vadd.f32 %v1113, %v1292
        %v1294 = vpop.f32.mrb[0].mxu0
        %1295 = vmatprep.mubr.f32.mxu0 0.0
        %1296 = vmatmul.mubr.f32.gmra.mrb[0].mxu0 %v1151
        %v1297 = vpop.f32.mrb[0].mxu0
        %v1298 = vadd.f32 %v1118, %v1297
        %v1299 = vpop.f32.mrb[0].mxu0
        %1300 = vdwg.mxu0
        %v1301 = vld [vmem:[#allocation10] sm:$0x1]
        %v1303 = vlaneseq
        %v1304 = vshrl.u32 %v1303, 7
        %v1305 = vsub.s32 0, %v1304
        %v1306 = vrot.slane %v1301, %v1305
        %v1308 = vadd.f32 %v1223, %v1306
        %v1309 = vadd.f32 %v1228, %v1306
        %v1310 = vadd.f32 %v1233, %v1306
        %v1311 = vadd.f32 %v1238, %v1306
        %v1312 = vadd.f32 %v1243, %v1306
        %v1313 = vadd.f32 %v1248, %v1306
        %v1314 = vadd.f32 %v1253, %v1306
        %v1315 = vadd.f32 %v1258, %v1306
        %v1316 = vadd.f32 %v1263, %v1306
        %v1317 = vadd.f32 %v1268, %v1306
        %v1318 = vadd.f32 %v1273, %v1306
        %v1319 = vadd.f32 %v1278, %v1306
        %v1320 = vadd.f32 %v1283, %v1306
        %v1321 = vadd.f32 %v1288, %v1306
        %v1322 = vadd.f32 %v1293, %v1306
        %v1323 = vadd.f32 %v1298, %v1306
        %v1324 = vsel %vm923, %v1308, 0.0
        %1325 = vadd.xlane.f32.xlu0 %v1324
        %v1326 = vpop.xlane.xlu0 %1325
        %v1327 = vsel %vm923, %v1309, 0.0
        %1328 = vadd.xlane.f32.xlu0 %v1327
        %v1329 = vpop.xlane.xlu0 %1328
        %v1330 = vsel %vm923, %v1310, 0.0
        %1331 = vadd.xlane.f32.xlu0 %v1330
        %v1332 = vpop.xlane.xlu0 %1331
        %v1333 = vsel %vm923, %v1311, 0.0
        %1334 = vadd.xlane.f32.xlu0 %v1333
        %v1335 = vpop.xlane.xlu0 %1334
        %v1336 = vsel %vm923, %v1312, 0.0
        %1337 = vadd.xlane.f32.xlu0 %v1336
        %v1338 = vpop.xlane.xlu0 %1337
        %v1339 = vsel %vm923, %v1313, 0.0
        %1340 = vadd.xlane.f32.xlu0 %v1339
        %v1341 = vpop.xlane.xlu0 %1340
        %v1342 = vsel %vm923, %v1314, 0.0
        %1343 = vadd.xlane.f32.xlu0 %v1342
        %v1344 = vpop.xlane.xlu0 %1343
        %v1345 = vsel %vm923, %v1315, 0.0
        %1346 = vadd.xlane.f32.xlu0 %v1345
        %v1347 = vpop.xlane.xlu0 %1346
        %v1348 = vsel %vm923, %v1316, 0.0
        %1349 = vadd.xlane.f32.xlu0 %v1348
        %v1350 = vpop.xlane.xlu0 %1349
        %v1351 = vsel %vm923, %v1317, 0.0
        %1352 = vadd.xlane.f32.xlu0 %v1351
        %v1353 = vpop.xlane.xlu0 %1352
        %v1354 = vsel %vm923, %v1318, 0.0
        %1355 = vadd.xlane.f32.xlu0 %v1354
        %v1356 = vpop.xlane.xlu0 %1355
        %v1357 = vsel %vm923, %v1319, 0.0
        %1358 = vadd.xlane.f32.xlu0 %v1357
        %v1359 = vpop.xlane.xlu0 %1358
        %v1360 = vsel %vm923, %v1320, 0.0
        %1361 = vadd.xlane.f32.xlu0 %v1360
        %v1362 = vpop.xlane.xlu0 %1361
        %v1363 = vsel %vm923, %v1321, 0.0
        %1364 = vadd.xlane.f32.xlu0 %v1363
        %v1365 = vpop.xlane.xlu0 %1364
        %v1366 = vsel %vm923, %v1322, 0.0
        %1367 = vadd.xlane.f32.xlu0 %v1366
        %v1368 = vpop.xlane.xlu0 %1367
        %v1369 = vsel %vm923, %v1323, 0.0
        %1370 = vadd.xlane.f32.xlu0 %v1369
        %v1371 = vpop.xlane.xlu0 %1370
        %v1372 = vrcp.pop 4.0
        %v1373 = vmul.f32 %v1326, %v1372
        %v1374 = vmul.f32 %v1329, %v1372
        %v1375 = vmul.f32 %v1332, %v1372
        %v1376 = vmul.f32 %v1335, %v1372
        %v1377 = vmul.f32 %v1338, %v1372
        %v1378 = vmul.f32 %v1341, %v1372
        %v1379 = vmul.f32 %v1344, %v1372
        %v1380 = vmul.f32 %v1347, %v1372
        %v1381 = vmul.f32 %v1350, %v1372
        %v1382 = vmul.f32 %v1353, %v1372
        %v1383 = vmul.f32 %v1356, %v1372
        %v1384 = vmul.f32 %v1359, %v1372
        %v1385 = vmul.f32 %v1362, %v1372
        %v1386 = vmul.f32 %v1365, %v1372
        %v1387 = vmul.f32 %v1368, %v1372
        %v1388 = vmul.f32 %v1371, %v1372
        %v1389 = vmul.f32 %v1308, %v1308
        %v1390 = vmul.f32 %v1309, %v1309
        %v1391 = vmul.f32 %v1310, %v1310
        %v1392 = vmul.f32 %v1311, %v1311
        %v1393 = vmul.f32 %v1312, %v1312
        %v1394 = vmul.f32 %v1313, %v1313
        %v1395 = vmul.f32 %v1314, %v1314
        %v1396 = vmul.f32 %v1315, %v1315
        %v1397 = vmul.f32 %v1316, %v1316
        %v1398 = vmul.f32 %v1317, %v1317
        %v1399 = vmul.f32 %v1318, %v1318
        %v1400 = vmul.f32 %v1319, %v1319
        %v1401 = vmul.f32 %v1320, %v1320
        %v1402 = vmul.f32 %v1321, %v1321
        %v1403 = vmul.f32 %v1322, %v1322
        %v1404 = vmul.f32 %v1323, %v1323
        %v1405 = vsel %vm923, %v1389, 0.0
        %1406 = vadd.xlane.f32.xlu0 %v1405
        %v1407 = vpop.xlane.xlu0 %1406
        %v1408 = vsel %vm923, %v1390, 0.0
        %1409 = vadd.xlane.f32.xlu0 %v1408
        %v1410 = vpop.xlane.xlu0 %1409
        %v1411 = vsel %vm923, %v1391, 0.0
        %1412 = vadd.xlane.f32.xlu0 %v1411
        %v1413 = vpop.xlane.xlu0 %1412
        %v1414 = vsel %vm923, %v1392, 0.0
        %1415 = vadd.xlane.f32.xlu0 %v1414
        %v1416 = vpop.xlane.xlu0 %1415
        %v1417 = vsel %vm923, %v1393, 0.0
        %1418 = vadd.xlane.f32.xlu0 %v1417
        %v1419 = vpop.xlane.xlu0 %1418
        %v1420 = vsel %vm923, %v1394, 0.0
        %1421 = vadd.xlane.f32.xlu0 %v1420
        %v1422 = vpop.xlane.xlu0 %1421
        %v1423 = vsel %vm923, %v1395, 0.0
        %1424 = vadd.xlane.f32.xlu0 %v1423
        %v1425 = vpop.xlane.xlu0 %1424
        %v1426 = vsel %vm923, %v1396, 0.0
        %1427 = vadd.xlane.f32.xlu0 %v1426
        %v1428 = vpop.xlane.xlu0 %1427
        %v1429 = vsel %vm923, %v1397, 0.0
        %1430 = vadd.xlane.f32.xlu0 %v1429
        %v1431 = vpop.xlane.xlu0 %1430
        %v1432 = vsel %vm923, %v1398, 0.0
        %1433 = vadd.xlane.f32.xlu0 %v1432
        %v1434 = vpop.xlane.xlu0 %1433
        %v1435 = vsel %vm923, %v1399, 0.0
        %1436 = vadd.xlane.f32.xlu0 %v1435
        %v1437 = vpop.xlane.xlu0 %1436
        %v1438 = vsel %vm923, %v1400, 0.0
        %1439 = vadd.xlane.f32.xlu0 %v1438
        %v1440 = vpop.xlane.xlu0 %1439
        %v1441 = vsel %vm923, %v1401, 0.0
        %1442 = vadd.xlane.f32.xlu0 %v1441
        %v1443 = vpop.xlane.xlu0 %1442
        %v1444 = vsel %vm923, %v1402, 0.0
        %1445 = vadd.xlane.f32.xlu0 %v1444
        %v1446 = vpop.xlane.xlu0 %1445
        %v1447 = vsel %vm923, %v1403, 0.0
        %1448 = vadd.xlane.f32.xlu0 %v1447
        %v1449 = vpop.xlane.xlu0 %1448
        %v1450 = vsel %vm923, %v1404, 0.0
        %1451 = vadd.xlane.f32.xlu0 %v1450
        %v1452 = vpop.xlane.xlu0 %1451
        %v1453 = vmul.f32 %v1407, %v1372
        %v1454 = vmul.f32 %v1410, %v1372
        %v1455 = vmul.f32 %v1413, %v1372
        %v1456 = vmul.f32 %v1416, %v1372
        %v1457 = vmul.f32 %v1419, %v1372
        %v1458 = vmul.f32 %v1422, %v1372
        %v1459 = vmul.f32 %v1425, %v1372
        %v1460 = vmul.f32 %v1428, %v1372
        %v1461 = vmul.f32 %v1431, %v1372
        %v1462 = vmul.f32 %v1434, %v1372
        %v1463 = vmul.f32 %v1437, %v1372
        %v1464 = vmul.f32 %v1440, %v1372
        %v1465 = vmul.f32 %v1443, %v1372
        %v1466 = vmul.f32 %v1446, %v1372
        %v1467 = vmul.f32 %v1449, %v1372
        %v1468 = vmul.f32 %v1452, %v1372
        %v1469 = vmul.f32 %v1373, %v1373
        %v1470 = vmul.f32 %v1374, %v1374
        %v1471 = vmul.f32 %v1375, %v1375
        %v1472 = vmul.f32 %v1376, %v1376
        %v1473 = vmul.f32 %v1377, %v1377
        %v1474 = vmul.f32 %v1378, %v1378
        %v1475 = vmul.f32 %v1379, %v1379
        %v1476 = vmul.f32 %v1380, %v1380
        %v1477 = vmul.f32 %v1381, %v1381
        %v1478 = vmul.f32 %v1382, %v1382
        %v1479 = vmul.f32 %v1383, %v1383
        %v1480 = vmul.f32 %v1384, %v1384
        %v1481 = vmul.f32 %v1385, %v1385
        %v1482 = vmul.f32 %v1386, %v1386
        %v1483 = vmul.f32 %v1387, %v1387
        %v1484 = vmul.f32 %v1388, %v1388
        %v1485 = vsub.f32 %v1453, %v1469
        %v1486 = vsub.f32 %v1454, %v1470
        %v1487 = vsub.f32 %v1455, %v1471
        %v1488 = vsub.f32 %v1456, %v1472
        %v1489 = vsub.f32 %v1457, %v1473
        %v1490 = vsub.f32 %v1458, %v1474
        %v1491 = vsub.f32 %v1459, %v1475
        %v1492 = vsub.f32 %v1460, %v1476
        %v1493 = vsub.f32 %v1461, %v1477
        %v1494 = vsub.f32 %v1462, %v1478
        %v1495 = vsub.f32 %v1463, %v1479
        %v1496 = vsub.f32 %v1464, %v1480
        %v1497 = vsub.f32 %v1465, %v1481
        %v1498 = vsub.f32 %v1466, %v1482
        %v1499 = vsub.f32 %v1467, %v1483
        %v1500 = vsub.f32 %v1468, %v1484
        %v1501 = vsub.f32 %v1308, %v1373
        %v1502 = vsub.f32 %v1309, %v1374
        %v1503 = vsub.f32 %v1310, %v1375
        %v1504 = vsub.f32 %v1311, %v1376
        %v1505 = vsub.f32 %v1312, %v1377
        %v1506 = vsub.f32 %v1313, %v1378
        %v1507 = vsub.f32 %v1314, %v1379
        %v1508 = vsub.f32 %v1315, %v1380
        %v1509 = vsub.f32 %v1316, %v1381
        %v1510 = vsub.f32 %v1317, %v1382
        %v1511 = vsub.f32 %v1318, %v1383
        %v1512 = vsub.f32 %v1319, %v1384
        %v1513 = vsub.f32 %v1320, %v1385
        %v1514 = vsub.f32 %v1321, %v1386
        %v1515 = vsub.f32 %v1322, %v1387
        %v1516 = vsub.f32 %v1323, %v1388
        %v1517 = vadd.f32 %v1485, 1e-06
        %v1518 = vadd.f32 %v1486, 1e-06
        %v1519 = vadd.f32 %v1487, 1e-06
        %v1520 = vadd.f32 %v1488, 1e-06
        %v1521 = vadd.f32 %v1489, 1e-06
        %v1522 = vadd.f32 %v1490, 1e-06
        %v1523 = vadd.f32 %v1491, 1e-06
        %v1524 = vadd.f32 %v1492, 1e-06
        %v1525 = vadd.f32 %v1493, 1e-06
        %v1526 = vadd.f32 %v1494, 1e-06
        %v1527 = vadd.f32 %v1495, 1e-06
        %v1528 = vadd.f32 %v1496, 1e-06
        %v1529 = vadd.f32 %v1497, 1e-06
        %v1530 = vadd.f32 %v1498, 1e-06
        %v1531 = vadd.f32 %v1499, 1e-06
        %v1532 = vadd.f32 %v1500, 1e-06
        %v1533 = vrsqrt.pop %v1517
        %v1534 = vrsqrt.pop %v1518
        %v1535 = vrsqrt.pop %v1519
        %v1536 = vrsqrt.pop %v1520
        %v1537 = vrsqrt.pop %v1521
        %v1538 = vrsqrt.pop %v1522
        %v1539 = vrsqrt.pop %v1523
        %v1540 = vrsqrt.pop %v1524
        %v1541 = vrsqrt.pop %v1525
        %v1542 = vrsqrt.pop %v1526
        %v1543 = vrsqrt.pop %v1527
        %v1544 = vrsqrt.pop %v1528
        %v1545 = vrsqrt.pop %v1529
        %v1546 = vrsqrt.pop %v1530
        %v1547 = vrsqrt.pop %v1531
        %v1548 = vrsqrt.pop %v1532
        %v1549 = vmul.f32 %v1501, %v1533
        %v1550 = vmul.f32 %v1502, %v1534
        %v1551 = vmul.f32 %v1503, %v1535
        %v1552 = vmul.f32 %v1504, %v1536
        %v1553 = vmul.f32 %v1505, %v1537
        %v1554 = vmul.f32 %v1506, %v1538
        %v1555 = vmul.f32 %v1507, %v1539
        %v1556 = vmul.f32 %v1508, %v1540
        %v1557 = vmul.f32 %v1509, %v1541
        %v1558 = vmul.f32 %v1510, %v1542
        %v1559 = vmul.f32 %v1511, %v1543
        %v1560 = vmul.f32 %v1512, %v1544
        %v1561 = vmul.f32 %v1513, %v1545
        %v1562 = vmul.f32 %v1514, %v1546
        %v1563 = vmul.f32 %v1515, %v1547
        %v1564 = vmul.f32 %v1516, %v1548
        %v1565 = vld [vmem:[#allocation11] sm:$0x1]
        %v1567 = vlaneseq
        %v1568 = vshrl.u32 %v1567, 7
        %v1569 = vsub.s32 0, %v1568
        %v1570 = vrot.slane %v1565, %v1569
        %v1572 = vmul.f32 %v1549, %v1570
        %v1573 = vmul.f32 %v1550, %v1570
        %v1574 = vmul.f32 %v1551, %v1570
        %v1575 = vmul.f32 %v1552, %v1570
        %v1576 = vmul.f32 %v1553, %v1570
        %v1577 = vmul.f32 %v1554, %v1570
        %v1578 = vmul.f32 %v1555, %v1570
        %v1579 = vmul.f32 %v1556, %v1570
        %v1580 = vmul.f32 %v1557, %v1570
        %v1581 = vmul.f32 %v1558, %v1570
        %v1582 = vmul.f32 %v1559, %v1570
        %v1583 = vmul.f32 %v1560, %v1570
        %v1584 = vmul.f32 %v1561, %v1570
        %v1585 = vmul.f32 %v1562, %v1570
        %v1586 = vmul.f32 %v1563, %v1570
        %v1587 = vmul.f32 %v1564, %v1570
        %v1588 = vld [vmem:[#allocation13] sm:$0x1]
        %v1590 = vlaneseq
        %v1591 = vshrl.u32 %v1590, 7
        %v1592 = vsub.s32 0, %v1591
        %v1593 = vrot.slane %v1588, %v1592
        %v1595 = vadd.f32 %v1572, %v1593
        %v1596 = vadd.f32 %v1573, %v1593
        %v1597 = vadd.f32 %v1574, %v1593
        %v1598 = vadd.f32 %v1575, %v1593
        %v1599 = vadd.f32 %v1576, %v1593
        %v1600 = vadd.f32 %v1577, %v1593
        %v1601 = vadd.f32 %v1578, %v1593
        %v1602 = vadd.f32 %v1579, %v1593
        %v1603 = vadd.f32 %v1580, %v1593
        %v1604 = vadd.f32 %v1581, %v1593
        %v1605 = vadd.f32 %v1582, %v1593
        %v1606 = vadd.f32 %v1583, %v1593
        %v1607 = vadd.f32 %v1584, %v1593
        %v1608 = vadd.f32 %v1585, %v1593
        %v1609 = vadd.f32 %v1586, %v1593
        %v1610 = vadd.f32 %v1587, %v1593
        %v1611 = vmul.f32 %v1595, 0.5
        %v1612 = vmul.f32 %v1596, 0.5
        %v1613 = vmul.f32 %v1597, 0.5
        %v1614 = vmul.f32 %v1598, 0.5
        %v1615 = vmul.f32 %v1599, 0.5
        %v1616 = vmul.f32 %v1600, 0.5
        %v1617 = vmul.f32 %v1601, 0.5
        %v1618 = vmul.f32 %v1602, 0.5
        %v1619 = vmul.f32 %v1603, 0.5
        %v1620 = vmul.f32 %v1604, 0.5
        %v1621 = vmul.f32 %v1605, 0.5
        %v1622 = vmul.f32 %v1606, 0.5
        %v1623 = vmul.f32 %v1607, 0.5
        %v1624 = vmul.f32 %v1608, 0.5
        %v1625 = vmul.f32 %v1609, 0.5
        %v1626 = vmul.f32 %v1610, 0.5
        %v1627 = vmul.f32 %v1595, 0.70710677
        %v1628 = vmul.f32 %v1596, 0.70710677
        %v1629 = vmul.f32 %v1597, 0.70710677
        %v1630 = vmul.f32 %v1598, 0.70710677
        %v1631 = vmul.f32 %v1599, 0.70710677
        %v1632 = vmul.f32 %v1600, 0.70710677
        %v1633 = vmul.f32 %v1601, 0.70710677
        %v1634 = vmul.f32 %v1602, 0.70710677
        %v1635 = vmul.f32 %v1603, 0.70710677
        %v1636 = vmul.f32 %v1604, 0.70710677
        %v1637 = vmul.f32 %v1605, 0.70710677
        %v1638 = vmul.f32 %v1606, 0.70710677
        %v1639 = vmul.f32 %v1607, 0.70710677
        %v1640 = vmul.f32 %v1608, 0.70710677
        %v1641 = vmul.f32 %v1609, 0.70710677
        %v1642 = vmul.f32 %v1610, 0.70710677
        %v1643 = verf.f32.pop %v1627
        %v1644 = verf.f32.pop %v1628
        %v1645 = verf.f32.pop %v1629
        %v1646 = verf.f32.pop %v1630
        %v1647 = verf.f32.pop %v1631
        %v1648 = verf.f32.pop %v1632
        %v1649 = verf.f32.pop %v1633
        %v1650 = verf.f32.pop %v1634
        %v1651 = verf.f32.pop %v1635
        %v1652 = verf.f32.pop %v1636
        %v1653 = verf.f32.pop %v1637
        %v1654 = verf.f32.pop %v1638
        %v1655 = verf.f32.pop %v1639
        %v1656 = verf.f32.pop %v1640
        %v1657 = verf.f32.pop %v1641
        %v1658 = verf.f32.pop %v1642
        %v1659 = vadd.f32 %v1643, 1.0
        %v1660 = vadd.f32 %v1644, 1.0
        %v1661 = vadd.f32 %v1645, 1.0
        %v1662 = vadd.f32 %v1646, 1.0
        %v1663 = vadd.f32 %v1647, 1.0
        %v1664 = vadd.f32 %v1648, 1.0
        %v1665 = vadd.f32 %v1649, 1.0
        %v1666 = vadd.f32 %v1650, 1.0
        %v1667 = vadd.f32 %v1651, 1.0
        %v1668 = vadd.f32 %v1652, 1.0
        %v1669 = vadd.f32 %v1653, 1.0
        %v1670 = vadd.f32 %v1654, 1.0
        %v1671 = vadd.f32 %v1655, 1.0
        %v1672 = vadd.f32 %v1656, 1.0
        %v1673 = vadd.f32 %v1657, 1.0
        %v1674 = vadd.f32 %v1658, 1.0
        %v1675 = vmul.f32 %v1611, %v1659
        %v1676 = vmul.f32 %v1612, %v1660
        %v1677 = vmul.f32 %v1613, %v1661
        %v1678 = vmul.f32 %v1614, %v1662
        %v1679 = vmul.f32 %v1615, %v1663
        %v1680 = vmul.f32 %v1616, %v1664
        %v1681 = vmul.f32 %v1617, %v1665
        %v1682 = vmul.f32 %v1618, %v1666
        %v1683 = vmul.f32 %v1619, %v1667
        %v1684 = vmul.f32 %v1620, %v1668
        %v1685 = vmul.f32 %v1621, %v1669
        %v1686 = vmul.f32 %v1622, %v1670
        %v1687 = vmul.f32 %v1623, %v1671
        %v1688 = vmul.f32 %v1624, %v1672
        %v1689 = vmul.f32 %v1625, %v1673
        %v1690 = vmul.f32 %v1626, %v1674
        %v1715 = vrot.slane %v424, 1
        %v1716 = vrot.slane %v425, 1
        %v1717 = vsel %vm687, %v1715, %v1716
        %v1718 = vrot.slane %v426, 1
        %v1719 = vsel %vm687, %v1716, %v1718
        %v1720 = vrot.slane %v427, 1
        %v1721 = vrot.slane %v428, 1
        %v1722 = vsel %vm687, %v1720, %v1721
        %v1723 = vrot.slane %v429, 1
        %v1724 = vsel %vm687, %v1721, %v1723
        %v1725 = vrot.slane %v430, 1
        %v1726 = vrot.slane %v431, 1
        %v1727 = vsel %vm687, %v1725, %v1726
        %v1728 = vrot.slane %v432, 1
        %v1729 = vsel %vm687, %v1726, %v1728
        %v1730 = vrot.slane %v433, 1
        %v1731 = vrot.slane %v434, 1
        %v1732 = vsel %vm687, %v1730, %v1731
        %v1733 = vrot.slane %v435, 1
        %v1734 = vsel %vm687, %v1731, %v1733
        %v1735 = vrot.slane %v436, 1
        %v1736 = vrot.slane %v437, 1
        %v1737 = vsel %vm687, %v1735, %v1736
        %v1738 = vrot.slane %v438, 1
        %v1739 = vsel %vm687, %v1736, %v1738
        %v1740 = vrot.slane %v439, 1
        %v1741 = vrot.slane %v440, 1
        %v1742 = vsel %vm687, %v1740, %v1741
        %v1743 = vrot.slane %v441, 1
        %v1744 = vsel %vm687, %v1741, %v1743
        %v1745 = vrot.slane %v442, 1
        %v1746 = vrot.slane %v443, 1
        %v1747 = vsel %vm687, %v1745, %v1746
        %v1748 = vrot.slane %v444, 1
        %v1749 = vsel %vm687, %v1746, %v1748
        %v1750 = vrot.slane %v445, 1
        %v1751 = vrot.slane %v446, 1
        %v1752 = vsel %vm687, %v1750, %v1751
        %v1753 = vrot.slane %v447, 1
        %v1754 = vsel %vm687, %v1751, %v1753
        %v1771 = vadd.f32 %v1717, %v1675
        %v1772 = vadd.f32 %v1719, %v1676
        %v1773 = vadd.f32 %v1722, %v1677
        %v1774 = vadd.f32 %v1724, %v1678
        %v1775 = vadd.f32 %v1727, %v1679
        %v1776 = vadd.f32 %v1729, %v1680
        %v1777 = vadd.f32 %v1732, %v1681
        %v1778 = vadd.f32 %v1734, %v1682
        %v1779 = vadd.f32 %v1737, %v1683
        %v1780 = vadd.f32 %v1739, %v1684
        %v1781 = vadd.f32 %v1742, %v1685
        %v1782 = vadd.f32 %v1744, %v1686
        %v1783 = vadd.f32 %v1747, %v1687
        %v1784 = vadd.f32 %v1749, %v1688
        %v1785 = vadd.f32 %v1752, %v1689
        %v1786 = vadd.f32 %v1754, %v1690
        %1787 = vst.msk [vmem:[%s421] sm:$0xff] %vm923, %v1771
        %1788 = vst.msk [vmem:[%s421 + $0x8] sm:$0xff] %vm923, %v1772
        %1789 = vst.msk [vmem:[%s421 + $0x10] sm:$0xff] %vm923, %v1773
        %1790 = vst.msk [vmem:[%s421 + $0x18] sm:$0xff] %vm923, %v1774
        %1791 = vst.msk [vmem:[%s421 + $0x20] sm:$0xff] %vm923, %v1775
        %1792 = vst.msk [vmem:[%s421 + $0x28] sm:$0xff] %vm923, %v1776
        %1793 = vst.msk [vmem:[%s421 + $0x30] sm:$0xff] %vm923, %v1777
        %1794 = vst.msk [vmem:[%s421 + $0x38] sm:$0xff] %vm923, %v1778
        %1795 = vst.msk [vmem:[%s421 + $0x40] sm:$0xff] %vm923, %v1779
        %1796 = vst.msk [vmem:[%s421 + $0x48] sm:$0xff] %vm923, %v1780
        %1797 = vst.msk [vmem:[%s421 + $0x50] sm:$0xff] %vm923, %v1781
        %1798 = vst.msk [vmem:[%s421 + $0x58] sm:$0xff] %vm923, %v1782
        %1799 = vst.msk [vmem:[%s421 + $0x60] sm:$0xff] %vm923, %v1783
        %1800 = vst.msk [vmem:[%s421 + $0x68] sm:$0xff] %vm923, %v1784
        %1801 = vst.msk [vmem:[%s421 + $0x70] sm:$0xff] %vm923, %v1785
        %1802 = vst.msk [vmem:[%s421 + $0x78] sm:$0xff] %vm923, %v1786
        %s1803 = sand.u32 %s212, 1
        %s1804 = scalar_lea.sflag [#allocation4], %s1803
        %s1805 = sand.u32 %s212, 1
        %s1806 = smul.addr %s1805, 128
        %s1807 = scalar_lea.vmem [#allocation14], %s1806
        // Predicated region
        $region77: #{tpu_custom_call.1} parent=47 // pred_check
          %p1808 = pneg %p222
        $region78: #{tpu_custom_call.1} parent=47 // pred_check_branch
          %1810 = sbr.rel (%p1808) target = $region80
        $region79: #{tpu_custom_call.1} parent=47 // pred_region
          %s1811 = smul.u32 8, %s34
          %s1813 = ssub.s32 2048, 2048
          %1814 = vsyncadd %s1804, %s1813
          %s1815 = smul.addr %s1811, 2
          %s1816 = smul.addr %s33, 32
          %s1817 = sadd.s32 %s1815, %s1816
          %s1818 = smul.addr %s1817, 128
          %s1819 = scalar_lea.hbm %s7, %s1818
          %s1820 = sshll.u32 %s1807, 4
          %s1821 = int_to_ptr.vmem [resolvable:$true] %s1820
          %1826 = dma.vmem_to_hbm [thread:$0]  %s1821, 2048, %s1819, %s1804, 128, 128, 8
        $region80: #{tpu_custom_call.1} parent=47 // pred_fallthru
          _
      $region48: #{tpu_custom_call.1} parent=5 // pred_fallthru
        _
      %p1827 = scmp.le.s32.totalorder 2, %s24
      // Predicated region
      $region81: #{tpu_custom_call.1} parent=5 // pred_check
        %p1828 = pneg %p1827
      $region82: #{tpu_custom_call.1} parent=5 // pred_check_branch
        %1830 = sbr.rel (%p1828) target = $region84
      $region83: #{tpu_custom_call.1} parent=5 // pred_region
        %s1831 = ssub.s32 %s24, 2
        // Predicated region
        $region85: #{tpu_custom_call.1} parent=83 // pred_check
          %p1832 = pneg %p228
        $region86: #{tpu_custom_call.1} parent=83 // pred_check_branch
          %1834 = sbr.rel (%p1832) target = $region88
        $region87: #{tpu_custom_call.1} parent=83 // pred_region
          %s1835 = sand.u32 %s213, 1
          %s1836 = scalar_lea.sflag [#allocation4], %s1835
          %s1837 = sand.u32 %s213, 1
          %s1838 = smul.addr %s1837, 128
          %s1839 = scalar_lea.vmem [#allocation14], %s1838
          %1840 = dma.done %s1836, 2048
        $region88: #{tpu_custom_call.1} parent=83 // pred_fallthru
          _
      $region84: #{tpu_custom_call.1} parent=5 // pred_fallthru
        _
    $region6: #{tpu_custom_call.1} parent=1 // loop_footer
      %s28 = sadd.s32 1, %s24
    $region7: #{tpu_custom_call.1} parent=1 // loop_footer_branch
      %23 = sbr.rel target = $region3
    $region8: #{tpu_custom_call.1} parent=1 // loop_exit
      _
    %1841 = vsyncpa [#allocation3], 1
    %s1842 = scalar_lea.sflag [#allocation3], 1
    %1843 = vsyncpa %s1842, 1
    %1844 = vsyncpa [#allocation6], 1
    %s1845 = scalar_lea.sflag [#allocation6], 1
    %1846 = vsyncpa %s1845, 1
    %1847 = vsyncpa [#allocation9], 1
    %1848 = vsyncpa [#allocation12], 1
    %1849 = vsyncpa [#allocation4], 1
    %s1850 = scalar_lea.sflag [#allocation4], 1
    %1851 = vsyncpa %s1850, 1

</llo_original>
